<compile_context>
chip_gen: v6e
topology: v6e:2x2x1
jax: 0.10.0
libtpu: 0.0.40
codegen_flags: <defaults>
</compile_context>

<pallas_src>
import numpy as np
import jax
import jax.numpy as jnp
from jax.experimental import pallas as pl
from jax.experimental.pallas import tpu as pltpu

# ----------------------------- logical config --------------------------------
F_NODE = 16          # input node feature dim
D_H = 64             # mpnn_hidden_dim (small stand-in for 300)
D_OUT = 64           # mpnn_output_dim (small stand-in for 300)
DEPTH = 3            # mpnn_depth
FNN_H = 32           # multitask_fnn_hidden_dim (small stand-in for 128)
N_TASKS = 7

NUM_POLYMERS = 3
MONOMERS_PER_POLYMER = 2          # each polymer = 2 monomers + 1 solvent
ATOMS_PER_MONOMER = 5
ATOMS_PER_SOLVENT = 4

NUM_MONOMER_GRAPHS = NUM_POLYMERS * MONOMERS_PER_POLYMER   # 6
NUM_SOLVENT_GRAPHS = NUM_POLYMERS                          # 3
N_MONO_NODES = NUM_MONOMER_GRAPHS * ATOMS_PER_MONOMER      # 30
N_SOLV_NODES = NUM_SOLVENT_GRAPHS * ATOMS_PER_SOLVENT      # 12

# Only the output path is padded: 8 rows (sublane multiple) x 128 lanes so the
# final store is an unmasked lane-dense vst.  Everything else stays natural.
LANE = 128
SUB = 8


def _rup(n, m):
    return ((n + m - 1) // m) * m


POLY_PAD = _rup(NUM_POLYMERS, SUB)       # 8
TASK_PAD = _rup(N_TASKS, LANE)           # 128


# ----------------------------- Pallas kernel ----------------------------------
def fused_justmpnn_kernel(
        mv_ref, ma_ref, mp_ref,          # monomer: node feats, adjacency, pooling (bf16)
        sv_ref, sa_ref, sp_ref,          # solvent: node feats, adjacency, pooling (bf16)
        avg_ref,                         # [POLY_PAD, Gm] per-polymer monomer averaging (f32)
        mwi_ref, mwh_ref, mwo_ref,       # monomer MPNN weights (bf16)
        swi_ref, swh_ref, swo_ref,       # solvent MPNN weights (bf16)
        w1_ref, b1_ref, w2_ref, b2_ref,  # 4-layer FNN (weights bf16, biases f32)
        w3_ref, b3_ref, w4_ref, b4_ref,
        out_ref):                        # [POLY_PAD, TASK_PAD] f32
    """Whole JustMPNN forward in one kernel; intermediates stay in VMEM/vregs.

    All jnp.dot operands are bf16 (MXU-native), accumulation is f32
    (preferred_element_type); ReLU and bias adds stay on the VPU in f32."""
    bf16 = jnp.bfloat16
    f32 = jnp.float32

    def mpnn(v, a, p, wi, wh, wo):
        h0 = jnp.maximum(jnp.dot(v, wi, preferred_element_type=f32), 0.0)
        h = h0
        for _ in range(DEPTH):                      # static unroll (depth=3)
            m = jnp.dot(a, h.astype(bf16), preferred_element_type=f32)
            h = jnp.maximum(
                h0 + jnp.dot(m.astype(bf16), wh, preferred_element_type=f32), 0.0)
        g = jnp.dot(p, h.astype(bf16), preferred_element_type=f32)   # mean readout
        return jnp.maximum(jnp.dot(g.astype(bf16), wo, preferred_element_type=f32), 0.0)

    mono = mpnn(mv_ref[...], ma_ref[...], mp_ref[...],
                mwi_ref[...], mwh_ref[...], mwo_ref[...])       # [Gm, D_OUT] f32
    solv = mpnn(sv_ref[...], sa_ref[...], sp_ref[...],
                swi_ref[...], swh_ref[...], swo_ref[...])       # [POLY_PAD, D_OUT] f32

    # average_monomer_add_solvent as a tiny dense matmul (K=6, f32) + add.
    combined = jnp.dot(avg_ref[...], mono, preferred_element_type=f32) + solv

    def dense_relu(x, w_ref, b_ref):
        return jnp.maximum(
            jnp.dot(x.astype(bf16), w_ref[...], preferred_element_type=f32)
            + b_ref[...], 0.0)

    x = dense_relu(combined, w1_ref, b1_ref)
    x = dense_relu(x, w2_ref, b2_ref)
    x = dense_relu(x, w3_ref, b3_ref)
    out_ref[...] = (jnp.dot(x.astype(bf16), w4_ref[...], preferred_element_type=f32)
                    + b4_ref[...])


# ----------------------------- wrapper -----------------------------------------
def prepare_inputs(mono_in, solv_in, avg_mat, mono_p, solv_p, fnn_p):
    """ONE-TIME input prep (outside the jitted forward): bf16 casts, plus the
    minimal row/lane padding needed for an [8,128] lane-dense output store."""
    bf16 = jnp.bfloat16
    f32 = jnp.float32
    mv, ma, mp = mono_in
    sv, sa, sp = solv_in
    mwi, mwh, mwo = mono_p
    swi, swh, swo = solv_p
    w1, b1, w2, b2, w3, b3, w4, b4 = fnn_p

    def bf(x):
        return jnp.asarray(x, bf16)

    sp = jnp.asarray(sp, f32)
    avg_mat = jnp.asarray(avg_mat, f32)
    w4 = jnp.asarray(w4, f32)
    b4 = jnp.asarray(b4, f32)
    sp_pad = jnp.pad(sp, ((0, POLY_PAD - sp.shape[0]), (0, 0)))
    avg_pad = jnp.pad(avg_mat, ((0, POLY_PAD - avg_mat.shape[0]), (0, 0)))
    w4_pad = jnp.pad(w4, ((0, 0), (0, TASK_PAD - w4.shape[1])))
    b4_pad = jnp.pad(b4, ((0, 0), (0, TASK_PAD - b4.shape[1])))

    return (
        bf(mv), bf(ma), bf(mp),
        bf(sv), bf(sa), bf(sp_pad),
        avg_pad.astype(f32),                         # tiny K=6 combine stays f32
        bf(mwi), bf(mwh), bf(mwo),
        bf(swi), bf(swh), bf(swo),
        bf(w1), jnp.asarray(b1, f32),
        bf(w2), jnp.asarray(b2, f32),
        bf(w3), jnp.asarray(b3, f32),
        bf(w4_pad), b4_pad.astype(f32),
    )


@jax.jit
def just_mpnn_forward(*args):
    """ONE fused pallas_call on pre-prepared (bf16, minimally padded) inputs.
    grid=() / whole-array blocks: total VMEM footprint ~120 KiB at these toy
    shapes, far below the default scoped limit on v5e/v6e/v7x."""
    out_padded = pl.pallas_call(
        fused_justmpnn_kernel,
        out_shape=jax.ShapeDtypeStruct((POLY_PAD, TASK_PAD), jnp.float32),
    )(*args)
    return out_padded[:NUM_POLYMERS, :N_TASKS]


# ----------------------------- data / params setup -----------------------------
def make_block_diag_graph(num_graphs, atoms_per_graph, key):
    """Random symmetric block-diagonal adjacency + node feats + mean-pool matrix."""
    n = num_graphs * atoms_per_graph
    kf, _ = jax.random.split(key)
    feats = jax.random.normal(kf, (n, F_NODE), dtype=jnp.float32)
    adj = np.zeros((n, n), dtype=np.float32)
    rng = np.random.RandomState(0)
    for g in range(num_graphs):
        s = g * atoms_per_graph
        blk = (rng.rand(atoms_per_graph, atoms_per_graph) > 0.5).astype(np.float32)
        blk = np.triu(blk, 1)
        blk = blk + blk.T                      # undirected, no self loops
        adj[s:s + atoms_per_graph, s:s + atoms_per_graph] = blk
    pool = np.zeros((num_graphs, n), dtype=np.float32)
    for g in range(num_graphs):
        s = g * atoms_per_graph
        pool[g, s:s + atoms_per_graph] = 1.0 / atoms_per_graph
    return feats, jnp.asarray(adj), jnp.asarray(pool)


def make_mpnn_params(key):
    k1, k2, k3 = jax.random.split(key, 3)
    wi = jax.random.normal(k1, (F_NODE, D_H), dtype=jnp.float32) * (1.0 / np.sqrt(F_NODE))
    wh = jax.random.normal(k2, (D_H, D_H), dtype=jnp.float32) * (1.0 / np.sqrt(D_H))
    wo = jax.random.normal(k3, (D_H, D_OUT), dtype=jnp.float32) * (1.0 / np.sqrt(D_H))
    return wi, wh, wo


def make_fnn_params(key):
    dims = [(D_OUT, FNN_H), (FNN_H, FNN_H), (FNN_H, FNN_H), (FNN_H, N_TASKS)]
    params = []
    keys = jax.random.split(key, 2 * len(dims))
    for i, (din, dout) in enumerate(dims):
        w = jax.random.normal(keys[2 * i], (din, dout), dtype=jnp.float32) * (1.0 / np.sqrt(din))
        b = jax.random.normal(keys[2 * i + 1], (1, dout), dtype=jnp.float32) * 0.01
        params += [w, b]
    return tuple(params)


def make_monomer_avg_matrix(polymer_mapping):
    """Matches JustMPNN.average_monomer_add_solvent: for polymer i with `count`
    molecules, average its first (count-1) monomer rows."""
    polymer_mapping = np.asarray(polymer_mapping)
    num_polymers = int(polymer_mapping.max()) + 1
    avg = np.zeros((num_polymers, NUM_MONOMER_GRAPHS), dtype=np.float32)
    monomer_idx = 0
    for i in range(num_polymers):
        count = int((polymer_mapping == i).sum())
        num_monomers = count - 1
        avg[i, monomer_idx:monomer_idx + num_monomers] = 1.0 / num_monomers
        monomer_idx += num_monomers
    return jnp.asarray(avg)


def reference_forward(args):
    """Pure-JAX reference on the SAME prepared (bf16/padded) operands so the
    comparison isolates kernel correctness from bf16 quantization."""
    (mv, ma, mp, sv, sa, sp, avg,
     mwi, mwh, mwo, swi, swh, swo,
     w1, b1, w2, b2, w3, b3, w4, b4) = args
    bf16, f32 = jnp.bfloat16, jnp.float32

    def mpnn_ref(v, a, p, wi, wh, wo):
        h0 = jnp.maximum(jnp.dot(v, wi, preferred_element_type=f32), 0.0)
        h = h0
        for _ in range(DEPTH):
            m = jnp.dot(a, h.astype(bf16), preferred_element_type=f32)
            h = jnp.maximum(h0 + jnp.dot(m.astype(bf16), wh, preferred_element_type=f32), 0.0)
        g = jnp.dot(p, h.astype(bf16), preferred_element_type=f32)
        return jnp.maximum(jnp.dot(g.astype(bf16), wo, preferred_element_type=f32), 0.0)

    mono = mpnn_ref(mv, ma, mp, mwi, mwh, mwo)
    solv = mpnn_ref(sv, sa, sp, swi, swh, swo)
    x = jnp.dot(avg, mono, preferred_element_type=f32) + solv
    x = jnp.maximum(jnp.dot(x.astype(bf16), w1, preferred_element_type=f32) + b1, 0.0)
    x = jnp.maximum(jnp.dot(x.astype(bf16), w2, preferred_element_type=f32) + b2, 0.0)
    x = jnp.maximum(jnp.dot(x.astype(bf16), w3, preferred_element_type=f32) + b3, 0.0)
    x = jnp.dot(x.astype(bf16), w4, preferred_element_type=f32) + b4
    return x[:NUM_POLYMERS, :N_TASKS]


if __name__ == "__main__":
    root = jax.random.PRNGKey(0)
    k_mono_g, k_solv_g, k_mono_p, k_solv_p, k_fnn = jax.random.split(root, 5)

    # batch['batch_monomer_graph'] / batch['batch_solvent_graph'] (dense form)
    mono_in = make_block_diag_graph(NUM_MONOMER_GRAPHS, ATOMS_PER_MONOMER, k_mono_g)
    solv_in = make_block_diag_graph(NUM_SOLVENT_GRAPHS, ATOMS_PER_SOLVENT, k_solv_g)

    # batch['polymer_mapping']: per-molecule polymer id (2 monomers + 1 solvent each)
    polymer_mapping = np.repeat(np.arange(NUM_POLYMERS), MONOMERS_PER_POLYMER + 1)
    avg_mat = make_monomer_avg_matrix(polymer_mapping)

    mono_params = make_mpnn_params(k_mono_p)   # monomer_mpnn weights
    solv_params = make_mpnn_params(k_solv_p)   # solvent_mpnn weights
    fnn_params = make_fnn_params(k_fnn)        # self.fnn weights

    # ---- one-time prep (bf16 cast + minimal output-path padding), then ONE
    # ---- fused Pallas kernel call ----
    args = prepare_inputs(mono_in, solv_in, avg_mat,
                          mono_params, solv_params, fnn_params)
    predictions = just_mpnn_forward(*args)
    predictions = jax.block_until_ready(predictions)

    # sanity check vs pure-JAX reference on identical operands
    ref = reference_forward(args)
    assert predictions.shape == (NUM_POLYMERS, N_TASKS)
    np.testing.assert_allclose(np.asarray(predictions), np.asarray(ref),
                               rtol=1e-2, atol=1e-2)
    print("KERNEL_OK")
</pallas_src>

<mosaic_0001>
module attributes {stable_mosaic.version = 11 : i64} {
  func.func @fused_justmpnn_kernel(%arg0: memref<30x16xbf16, #tpu.memory_space<vmem>>, %arg1: memref<30x30xbf16, #tpu.memory_space<vmem>>, %arg2: memref<6x30xbf16, #tpu.memory_space<vmem>>, %arg3: memref<12x16xbf16, #tpu.memory_space<vmem>>, %arg4: memref<12x12xbf16, #tpu.memory_space<vmem>>, %arg5: memref<8x12xbf16, #tpu.memory_space<vmem>>, %arg6: memref<8x6xf32, #tpu.memory_space<vmem>>, %arg7: memref<16x64xbf16, #tpu.memory_space<vmem>>, %arg8: memref<64x64xbf16, #tpu.memory_space<vmem>>, %arg9: memref<64x64xbf16, #tpu.memory_space<vmem>>, %arg10: memref<16x64xbf16, #tpu.memory_space<vmem>>, %arg11: memref<64x64xbf16, #tpu.memory_space<vmem>>, %arg12: memref<64x64xbf16, #tpu.memory_space<vmem>>, %arg13: memref<64x32xbf16, #tpu.memory_space<vmem>>, %arg14: memref<1x32xf32, #tpu.memory_space<vmem>>, %arg15: memref<32x32xbf16, #tpu.memory_space<vmem>>, %arg16: memref<1x32xf32, #tpu.memory_space<vmem>>, %arg17: memref<32x32xbf16, #tpu.memory_space<vmem>>, %arg18: memref<1x32xf32, #tpu.memory_space<vmem>>, %arg19: memref<32x128xbf16, #tpu.memory_space<vmem>>, %arg20: memref<1x128xf32, #tpu.memory_space<vmem>>, %arg21: memref<8x128xf32, #tpu.memory_space<vmem>>) attributes {dimension_semantics = [], scalar_prefetch = 0 : i64, scratch_operands = 0 : i64, tpu.core_type = #tpu.core_type<tc>} {
    %c0 = arith.constant 0 : index
    %c0_0 = arith.constant 0 : index
    %0 = vector.load %arg0[%c0, %c0_0] : memref<30x16xbf16, #tpu.memory_space<vmem>>, vector<30x16xbf16>
    %c0_1 = arith.constant 0 : index
    %c0_2 = arith.constant 0 : index
    %1 = vector.load %arg1[%c0_1, %c0_2] : memref<30x30xbf16, #tpu.memory_space<vmem>>, vector<30x30xbf16>
    %c0_3 = arith.constant 0 : index
    %c0_4 = arith.constant 0 : index
    %2 = vector.load %arg2[%c0_3, %c0_4] : memref<6x30xbf16, #tpu.memory_space<vmem>>, vector<6x30xbf16>
    %c0_5 = arith.constant 0 : index
    %c0_6 = arith.constant 0 : index
    %3 = vector.load %arg7[%c0_5, %c0_6] : memref<16x64xbf16, #tpu.memory_space<vmem>>, vector<16x64xbf16>
    %c0_7 = arith.constant 0 : index
    %c0_8 = arith.constant 0 : index
    %4 = vector.load %arg8[%c0_7, %c0_8] : memref<64x64xbf16, #tpu.memory_space<vmem>>, vector<64x64xbf16>
    %c0_9 = arith.constant 0 : index
    %c0_10 = arith.constant 0 : index
    %5 = vector.load %arg9[%c0_9, %c0_10] : memref<64x64xbf16, #tpu.memory_space<vmem>>, vector<64x64xbf16>
    %cst = arith.constant dense<0.000000e+00> : vector<30x64xf32>
    %6 = tpu.matmul %0, %3, %cst {dimension_numbers = #tpu.dot_dimension_numbers<[1], [0], [0], [1], [0, 0, 1, 1], [], []>} : vector<30x16xbf16>, vector<16x64xbf16>, vector<30x64xf32> -> vector<30x64xf32>
    %cst_11 = arith.constant 0.000000e+00 : f32
    %7 = vector.broadcast %cst_11 : f32 to vector<30x64xf32>
    %8 = arith.maximumf %6, %7 : vector<30x64xf32>
    %9 = arith.truncf %8 : vector<30x64xf32> to vector<30x64xbf16>
    %cst_12 = arith.constant dense<0.000000e+00> : vector<30x64xf32>
    %10 = tpu.matmul %1, %9, %cst_12 {dimension_numbers = #tpu.dot_dimension_numbers<[1], [0], [0], [1], [0, 0, 1, 1], [], []>} : vector<30x30xbf16>, vector<30x64xbf16>, vector<30x64xf32> -> vector<30x64xf32>
    %11 = arith.truncf %10 : vector<30x64xf32> to vector<30x64xbf16>
    %cst_13 = arith.constant dense<0.000000e+00> : vector<30x64xf32>
    %12 = tpu.matmul %11, %4, %cst_13 {dimension_numbers = #tpu.dot_dimension_numbers<[1], [0], [0], [1], [0, 0, 1, 1], [], []>} : vector<30x64xbf16>, vector<64x64xbf16>, vector<30x64xf32> -> vector<30x64xf32>
    %13 = arith.addf %8, %12 : vector<30x64xf32>
    %cst_14 = arith.constant 0.000000e+00 : f32
    %14 = vector.broadcast %cst_14 : f32 to vector<30x64xf32>
    %15 = arith.maximumf %13, %14 : vector<30x64xf32>
    %16 = arith.truncf %15 : vector<30x64xf32> to vector<30x64xbf16>
    %cst_15 = arith.constant dense<0.000000e+00> : vector<30x64xf32>
    %17 = tpu.matmul %1, %16, %cst_15 {dimension_numbers = #tpu.dot_dimension_numbers<[1], [0], [0], [1], [0, 0, 1, 1], [], []>} : vector<30x30xbf16>, vector<30x64xbf16>, vector<30x64xf32> -> vector<30x64xf32>
    %18 = arith.truncf %17 : vector<30x64xf32> to vector<30x64xbf16>
    %cst_16 = arith.constant dense<0.000000e+00> : vector<30x64xf32>
    %19 = tpu.matmul %18, %4, %cst_16 {dimension_numbers = #tpu.dot_dimension_numbers<[1], [0], [0], [1], [0, 0, 1, 1], [], []>} : vector<30x64xbf16>, vector<64x64xbf16>, vector<30x64xf32> -> vector<30x64xf32>
    %20 = arith.addf %8, %19 : vector<30x64xf32>
    %cst_17 = arith.constant 0.000000e+00 : f32
    %21 = vector.broadcast %cst_17 : f32 to vector<30x64xf32>
    %22 = arith.maximumf %20, %21 : vector<30x64xf32>
    %23 = arith.truncf %22 : vector<30x64xf32> to vector<30x64xbf16>
    %cst_18 = arith.constant dense<0.000000e+00> : vector<30x64xf32>
    %24 = tpu.matmul %1, %23, %cst_18 {dimension_numbers = #tpu.dot_dimension_numbers<[1], [0], [0], [1], [0, 0, 1, 1], [], []>} : vector<30x30xbf16>, vector<30x64xbf16>, vector<30x64xf32> -> vector<30x64xf32>
    %25 = arith.truncf %24 : vector<30x64xf32> to vector<30x64xbf16>
    %cst_19 = arith.constant dense<0.000000e+00> : vector<30x64xf32>
    %26 = tpu.matmul %25, %4, %cst_19 {dimension_numbers = #tpu.dot_dimension_numbers<[1], [0], [0], [1], [0, 0, 1, 1], [], []>} : vector<30x64xbf16>, vector<64x64xbf16>, vector<30x64xf32> -> vector<30x64xf32>
    %27 = arith.addf %8, %26 : vector<30x64xf32>
    %cst_20 = arith.constant 0.000000e+00 : f32
    %28 = vector.broadcast %cst_20 : f32 to vector<30x64xf32>
    %29 = arith.maximumf %27, %28 : vector<30x64xf32>
    %30 = arith.truncf %29 : vector<30x64xf32> to vector<30x64xbf16>
    %cst_21 = arith.constant dense<0.000000e+00> : vector<6x64xf32>
    %31 = tpu.matmul %2, %30, %cst_21 {dimension_numbers = #tpu.dot_dimension_numbers<[1], [0], [0], [1], [0, 0, 1, 1], [], []>} : vector<6x30xbf16>, vector<30x64xbf16>, vector<6x64xf32> -> vector<6x64xf32>
    %32 = arith.truncf %31 : vector<6x64xf32> to vector<6x64xbf16>
    %cst_22 = arith.constant dense<0.000000e+00> : vector<6x64xf32>
    %33 = tpu.matmul %32, %5, %cst_22 {dimension_numbers = #tpu.dot_dimension_numbers<[1], [0], [0], [1], [0, 0, 1, 1], [], []>} : vector<6x64xbf16>, vector<64x64xbf16>, vector<6x64xf32> -> vector<6x64xf32>
    %cst_23 = arith.constant 0.000000e+00 : f32
    %34 = vector.broadcast %cst_23 : f32 to vector<6x64xf32>
    %35 = arith.maximumf %33, %34 : vector<6x64xf32>
    %c0_24 = arith.constant 0 : index
    %c0_25 = arith.constant 0 : index
    %36 = vector.load %arg3[%c0_24, %c0_25] : memref<12x16xbf16, #tpu.memory_space<vmem>>, vector<12x16xbf16>
    %c0_26 = arith.constant 0 : index
    %c0_27 = arith.constant 0 : index
    %37 = vector.load %arg4[%c0_26, %c0_27] : memref<12x12xbf16, #tpu.memory_space<vmem>>, vector<12x12xbf16>
    %c0_28 = arith.constant 0 : index
    %c0_29 = arith.constant 0 : index
    %38 = vector.load %arg5[%c0_28, %c0_29] : memref<8x12xbf16, #tpu.memory_space<vmem>>, vector<8x12xbf16>
    %c0_30 = arith.constant 0 : index
    %c0_31 = arith.constant 0 : index
    %39 = vector.load %arg10[%c0_30, %c0_31] : memref<16x64xbf16, #tpu.memory_space<vmem>>, vector<16x64xbf16>
    %c0_32 = arith.constant 0 : index
    %c0_33 = arith.constant 0 : index
    %40 = vector.load %arg11[%c0_32, %c0_33] : memref<64x64xbf16, #tpu.memory_space<vmem>>, vector<64x64xbf16>
    %c0_34 = arith.constant 0 : index
    %c0_35 = arith.constant 0 : index
    %41 = vector.load %arg12[%c0_34, %c0_35] : memref<64x64xbf16, #tpu.memory_space<vmem>>, vector<64x64xbf16>
    %cst_36 = arith.constant dense<0.000000e+00> : vector<12x64xf32>
    %42 = tpu.matmul %36, %39, %cst_36 {dimension_numbers = #tpu.dot_dimension_numbers<[1], [0], [0], [1], [0, 0, 1, 1], [], []>} : vector<12x16xbf16>, vector<16x64xbf16>, vector<12x64xf32> -> vector<12x64xf32>
    %cst_37 = arith.constant 0.000000e+00 : f32
    %43 = vector.broadcast %cst_37 : f32 to vector<12x64xf32>
    %44 = arith.maximumf %42, %43 : vector<12x64xf32>
    %45 = arith.truncf %44 : vector<12x64xf32> to vector<12x64xbf16>
    %cst_38 = arith.constant dense<0.000000e+00> : vector<12x64xf32>
    %46 = tpu.matmul %37, %45, %cst_38 {dimension_numbers = #tpu.dot_dimension_numbers<[1], [0], [0], [1], [0, 0, 1, 1], [], []>} : vector<12x12xbf16>, vector<12x64xbf16>, vector<12x64xf32> -> vector<12x64xf32>
    %47 = arith.truncf %46 : vector<12x64xf32> to vector<12x64xbf16>
    %cst_39 = arith.constant dense<0.000000e+00> : vector<12x64xf32>
    %48 = tpu.matmul %47, %40, %cst_39 {dimension_numbers = #tpu.dot_dimension_numbers<[1], [0], [0], [1], [0, 0, 1, 1], [], []>} : vector<12x64xbf16>, vector<64x64xbf16>, vector<12x64xf32> -> vector<12x64xf32>
    %49 = arith.addf %44, %48 : vector<12x64xf32>
    %cst_40 = arith.constant 0.000000e+00 : f32
    %50 = vector.broadcast %cst_40 : f32 to vector<12x64xf32>
    %51 = arith.maximumf %49, %50 : vector<12x64xf32>
    %52 = arith.truncf %51 : vector<12x64xf32> to vector<12x64xbf16>
    %cst_41 = arith.constant dense<0.000000e+00> : vector<12x64xf32>
    %53 = tpu.matmul %37, %52, %cst_41 {dimension_numbers = #tpu.dot_dimension_numbers<[1], [0], [0], [1], [0, 0, 1, 1], [], []>} : vector<12x12xbf16>, vector<12x64xbf16>, vector<12x64xf32> -> vector<12x64xf32>
    %54 = arith.truncf %53 : vector<12x64xf32> to vector<12x64xbf16>
    %cst_42 = arith.constant dense<0.000000e+00> : vector<12x64xf32>
    %55 = tpu.matmul %54, %40, %cst_42 {dimension_numbers = #tpu.dot_dimension_numbers<[1], [0], [0], [1], [0, 0, 1, 1], [], []>} : vector<12x64xbf16>, vector<64x64xbf16>, vector<12x64xf32> -> vector<12x64xf32>
    %56 = arith.addf %44, %55 : vector<12x64xf32>
    %cst_43 = arith.constant 0.000000e+00 : f32
    %57 = vector.broadcast %cst_43 : f32 to vector<12x64xf32>
    %58 = arith.maximumf %56, %57 : vector<12x64xf32>
    %59 = arith.truncf %58 : vector<12x64xf32> to vector<12x64xbf16>
    %cst_44 = arith.constant dense<0.000000e+00> : vector<12x64xf32>
    %60 = tpu.matmul %37, %59, %cst_44 {dimension_numbers = #tpu.dot_dimension_numbers<[1], [0], [0], [1], [0, 0, 1, 1], [], []>} : vector<12x12xbf16>, vector<12x64xbf16>, vector<12x64xf32> -> vector<12x64xf32>
    %61 = arith.truncf %60 : vector<12x64xf32> to vector<12x64xbf16>
    %cst_45 = arith.constant dense<0.000000e+00> : vector<12x64xf32>
    %62 = tpu.matmul %61, %40, %cst_45 {dimension_numbers = #tpu.dot_dimension_numbers<[1], [0], [0], [1], [0, 0, 1, 1], [], []>} : vector<12x64xbf16>, vector<64x64xbf16>, vector<12x64xf32> -> vector<12x64xf32>
    %63 = arith.addf %44, %62 : vector<12x64xf32>
    %cst_46 = arith.constant 0.000000e+00 : f32
    %64 = vector.broadcast %cst_46 : f32 to vector<12x64xf32>
    %65 = arith.maximumf %63, %64 : vector<12x64xf32>
    %66 = arith.truncf %65 : vector<12x64xf32> to vector<12x64xbf16>
    %cst_47 = arith.constant dense<0.000000e+00> : vector<8x64xf32>
    %67 = tpu.matmul %38, %66, %cst_47 {dimension_numbers = #tpu.dot_dimension_numbers<[1], [0], [0], [1], [0, 0, 1, 1], [], []>} : vector<8x12xbf16>, vector<12x64xbf16>, vector<8x64xf32> -> vector<8x64xf32>
    %68 = arith.truncf %67 : vector<8x64xf32> to vector<8x64xbf16>
    %cst_48 = arith.constant dense<0.000000e+00> : vector<8x64xf32>
    %69 = tpu.matmul %68, %41, %cst_48 {dimension_numbers = #tpu.dot_dimension_numbers<[1], [0], [0], [1], [0, 0, 1, 1], [], []>} : vector<8x64xbf16>, vector<64x64xbf16>, vector<8x64xf32> -> vector<8x64xf32>
    %cst_49 = arith.constant 0.000000e+00 : f32
    %70 = vector.broadcast %cst_49 : f32 to vector<8x64xf32>
    %71 = arith.maximumf %69, %70 : vector<8x64xf32>
    %c0_50 = arith.constant 0 : index
    %c0_51 = arith.constant 0 : index
    %72 = vector.load %arg6[%c0_50, %c0_51] : memref<8x6xf32, #tpu.memory_space<vmem>>, vector<8x6xf32>
    %cst_52 = arith.constant dense<0.000000e+00> : vector<8x64xf32>
    %73 = tpu.matmul %72, %35, %cst_52 {dimension_numbers = #tpu.dot_dimension_numbers<[1], [0], [0], [1], [0, 0, 1, 1], [], []>} : vector<8x6xf32>, vector<6x64xf32>, vector<8x64xf32> -> vector<8x64xf32>
    %74 = arith.addf %73, %71 : vector<8x64xf32>
    %75 = arith.truncf %74 : vector<8x64xf32> to vector<8x64xbf16>
    %c0_53 = arith.constant 0 : index
    %c0_54 = arith.constant 0 : index
    %76 = vector.load %arg13[%c0_53, %c0_54] : memref<64x32xbf16, #tpu.memory_space<vmem>>, vector<64x32xbf16>
    %cst_55 = arith.constant dense<0.000000e+00> : vector<8x32xf32>
    %77 = tpu.matmul %75, %76, %cst_55 {dimension_numbers = #tpu.dot_dimension_numbers<[1], [0], [0], [1], [0, 0, 1, 1], [], []>} : vector<8x64xbf16>, vector<64x32xbf16>, vector<8x32xf32> -> vector<8x32xf32>
    %c0_56 = arith.constant 0 : index
    %c0_57 = arith.constant 0 : index
    %78 = vector.load %arg14[%c0_56, %c0_57] : memref<1x32xf32, #tpu.memory_space<vmem>>, vector<1x32xf32>
    %79 = vector.broadcast %78 : vector<1x32xf32> to vector<8x32xf32>
    %80 = arith.addf %77, %79 : vector<8x32xf32>
    %cst_58 = arith.constant 0.000000e+00 : f32
    %81 = vector.broadcast %cst_58 : f32 to vector<8x32xf32>
    %82 = arith.maximumf %80, %81 : vector<8x32xf32>
    %83 = arith.truncf %82 : vector<8x32xf32> to vector<8x32xbf16>
    %c0_59 = arith.constant 0 : index
    %c0_60 = arith.constant 0 : index
    %84 = vector.load %arg15[%c0_59, %c0_60] : memref<32x32xbf16, #tpu.memory_space<vmem>>, vector<32x32xbf16>
    %cst_61 = arith.constant dense<0.000000e+00> : vector<8x32xf32>
    %85 = tpu.matmul %83, %84, %cst_61 {dimension_numbers = #tpu.dot_dimension_numbers<[1], [0], [0], [1], [0, 0, 1, 1], [], []>} : vector<8x32xbf16>, vector<32x32xbf16>, vector<8x32xf32> -> vector<8x32xf32>
    %c0_62 = arith.constant 0 : index
    %c0_63 = arith.constant 0 : index
    %86 = vector.load %arg16[%c0_62, %c0_63] : memref<1x32xf32, #tpu.memory_space<vmem>>, vector<1x32xf32>
    %87 = vector.broadcast %86 : vector<1x32xf32> to vector<8x32xf32>
    %88 = arith.addf %85, %87 : vector<8x32xf32>
    %cst_64 = arith.constant 0.000000e+00 : f32
    %89 = vector.broadcast %cst_64 : f32 to vector<8x32xf32>
    %90 = arith.maximumf %88, %89 : vector<8x32xf32>
    %91 = arith.truncf %90 : vector<8x32xf32> to vector<8x32xbf16>
    %c0_65 = arith.constant 0 : index
    %c0_66 = arith.constant 0 : index
    %92 = vector.load %arg17[%c0_65, %c0_66] : memref<32x32xbf16, #tpu.memory_space<vmem>>, vector<32x32xbf16>
    %cst_67 = arith.constant dense<0.000000e+00> : vector<8x32xf32>
    %93 = tpu.matmul %91, %92, %cst_67 {dimension_numbers = #tpu.dot_dimension_numbers<[1], [0], [0], [1], [0, 0, 1, 1], [], []>} : vector<8x32xbf16>, vector<32x32xbf16>, vector<8x32xf32> -> vector<8x32xf32>
    %c0_68 = arith.constant 0 : index
    %c0_69 = arith.constant 0 : index
    %94 = vector.load %arg18[%c0_68, %c0_69] : memref<1x32xf32, #tpu.memory_space<vmem>>, vector<1x32xf32>
    %95 = vector.broadcast %94 : vector<1x32xf32> to vector<8x32xf32>
    %96 = arith.addf %93, %95 : vector<8x32xf32>
    %cst_70 = arith.constant 0.000000e+00 : f32
    %97 = vector.broadcast %cst_70 : f32 to vector<8x32xf32>
    %98 = arith.maximumf %96, %97 : vector<8x32xf32>
    %99 = arith.truncf %98 : vector<8x32xf32> to vector<8x32xbf16>
    %c0_71 = arith.constant 0 : index
    %c0_72 = arith.constant 0 : index
    %100 = vector.load %arg19[%c0_71, %c0_72] : memref<32x128xbf16, #tpu.memory_space<vmem>>, vector<32x128xbf16>
    %cst_73 = arith.constant dense<0.000000e+00> : vector<8x128xf32>
    %101 = tpu.matmul %99, %100, %cst_73 {dimension_numbers = #tpu.dot_dimension_numbers<[1], [0], [0], [1], [0, 0, 1, 1], [], []>} : vector<8x32xbf16>, vector<32x128xbf16>, vector<8x128xf32> -> vector<8x128xf32>
    %c0_74 = arith.constant 0 : index
    %c0_75 = arith.constant 0 : index
    %102 = vector.load %arg20[%c0_74, %c0_75] : memref<1x128xf32, #tpu.memory_space<vmem>>, vector<1x128xf32>
    %103 = vector.broadcast %102 : vector<1x128xf32> to vector<8x128xf32>
    %104 = arith.addf %101, %103 : vector<8x128xf32>
    %c0_76 = arith.constant 0 : index
    %c0_77 = arith.constant 0 : index
    %105 = vector.load %arg21[%c0_76, %c0_77] : memref<8x128xf32, #tpu.memory_space<vmem>>, vector<8x128xf32>
    tpu.vector_store %arg21[%c0_76, %c0_77], %104 {strides = array<i32>} : memref<8x128xf32, #tpu.memory_space<vmem>>, vector<8x128xf32>,
    return
  }
}

</mosaic_0001>

<llo_original>
// kernel: just_mpnn_forward.1
$region0: #{just_mpnn_forward.1}
  #allocation0 [shape = 'u32[]', space=smem, size = 0x4, offset = 0x4, fixed_abs, tag = 'smem constant byte address 0x4 - core index']
  #allocation1 [shape = 'u32[144,128]{1,0:T(1,128)}', space=vmem, size = 0x12000, scoped, tag = 'internal scratch']
  %s0 = inlined_call_operand.vmem [shape: bf16[30,16], index: 0, kind: input, shape index: {}]
  %s1 = inlined_call_operand.hbm [shape: bf16[30,30], index: 1, kind: input, shape index: {}]
  %s2 = inlined_call_operand.hbm [shape: bf16[6,30], index: 2, kind: input, shape index: {}]
  %s3 = inlined_call_operand.hbm [shape: bf16[12,16], index: 3, kind: input, shape index: {}]
  %s4 = inlined_call_operand.hbm [shape: bf16[12,12], index: 4, kind: input, shape index: {}]
  %s5 = inlined_call_operand.hbm [shape: bf16[8,12], index: 5, kind: input, shape index: {}]
  %s6 = inlined_call_operand.hbm [shape: f32[8,6], index: 6, kind: input, shape index: {}]
  %s7 = inlined_call_operand.hbm [shape: bf16[16,64], index: 7, kind: input, shape index: {}]
  %s8 = inlined_call_operand.vmem [shape: bf16[64,64], index: 8, kind: input, shape index: {}]
  %s9 = inlined_call_operand.vmem [shape: bf16[64,64], index: 9, kind: input, shape index: {}]
  %s10 = inlined_call_operand.hbm [shape: bf16[16,64], index: 10, kind: input, shape index: {}]
  %s11 = inlined_call_operand.hbm [shape: bf16[64,64], index: 11, kind: input, shape index: {}]
  %s12 = inlined_call_operand.hbm [shape: bf16[64,64], index: 12, kind: input, shape index: {}]
  %s13 = inlined_call_operand.vmem [shape: bf16[64,32], index: 13, kind: input, shape index: {}]
  %s14 = inlined_call_operand.vmem [shape: f32[1,32], index: 14, kind: input, shape index: {}]
  %s15 = inlined_call_operand.vmem [shape: bf16[32,32], index: 15, kind: input, shape index: {}]
  %s16 = inlined_call_operand.vmem [shape: f32[1,32], index: 16, kind: input, shape index: {}]
  %s17 = inlined_call_operand.vmem [shape: bf16[32,32], index: 17, kind: input, shape index: {}]
  %s18 = inlined_call_operand.vmem [shape: f32[1,32], index: 18, kind: input, shape index: {}]
  %s19 = inlined_call_operand.hbm [shape: bf16[32,128], index: 19, kind: input, shape index: {}]
  %s20 = inlined_call_operand.vmem [shape: f32[1,128], index: 20, kind: input, shape index: {}]
  %s21 = inlined_call_operand.vmem [shape: f32[8,128], index: 21, kind: output, shape index: {}]
  %s22 = sld [smem:[#allocation0]]
  $region138: #{just_mpnn_forward.1} parent=0
    _
  %s24 = ssub.s32 1, %s22
  %s25 = scalar_select 0, %s24, %s22
  $region1: #{just_mpnn_forward.1} parent=0
    #allocation2 [shape = 'u8[8192]{0}', space=vmem, size = 0x2000, scoped, tag = 'input window, operand 1, single buffered']
    #allocation3 [shape = 's32[1]{0}', space=sflag, size = 0x4, scoped, tag = 'scoped memory for just_mpnn_forward.1']
    #allocation4 [shape = 'u8[2048]{0}', space=vmem, size = 0x800, scoped, tag = 'input window, operand 2, single buffered']
    #allocation5 [shape = 's32[1]{0}', space=sflag, size = 0x4, scoped, tag = 'scoped memory for just_mpnn_forward.1']
    #allocation6 [shape = 'u8[4096]{0}', space=vmem, size = 0x1000, scoped, tag = 'input window, operand 3, single buffered']
    #allocation7 [shape = 'u8[4096]{0}', space=vmem, size = 0x1000, scoped, tag = 'input window, operand 4, single buffered']
    #allocation8 [shape = 's32[1]{0}', space=sflag, size = 0x4, scoped, tag = 'scoped memory for just_mpnn_forward.1']
    #allocation9 [shape = 'u8[2048]{0}', space=vmem, size = 0x800, scoped, tag = 'input window, operand 5, single buffered']
    #allocation10 [shape = 'u8[4096]{0}', space=vmem, size = 0x1000, scoped, tag = 'input window, operand 6, single buffered']
    #allocation11 [shape = 's32[1]{0}', space=sflag, size = 0x4, scoped, tag = 'scoped memory for just_mpnn_forward.1']
    #allocation12 [shape = 'u8[4096]{0}', space=vmem, size = 0x1000, scoped, tag = 'input window, operand 7, single buffered']
    #allocation13 [shape = 'u8[4096]{0}', space=vmem, size = 0x1000, scoped, tag = 'input window, operand 10, single buffered']
    #allocation14 [shape = 's32[1]{0}', space=sflag, size = 0x4, scoped, tag = 'scoped memory for just_mpnn_forward.1']
    #allocation15 [shape = 'u8[16384]{0}', space=vmem, size = 0x4000, scoped, tag = 'input window, operand 11, single buffered']
    #allocation16 [shape = 'u8[16384]{0}', space=vmem, size = 0x4000, scoped, tag = 'input window, operand 12, single buffered']
    #allocation17 [shape = 's32[1]{0}', space=sflag, size = 0x4, scoped, tag = 'scoped memory for just_mpnn_forward.1']
    #allocation18 [shape = 'u8[8192]{0}', space=vmem, size = 0x2000, scoped, tag = 'input window, operand 19, single buffered']
    %26 = vsyncpa [#allocation3], 0
    %27 = vsyncpa [#allocation5], 0
    %28 = vsyncpa [#allocation8], 0
    %29 = vsyncpa [#allocation11], 0
    %30 = vsyncpa [#allocation14], 0
    %31 = vsyncpa [#allocation17], 0
    // Predicated region
    $region2: #{just_mpnn_forward.1} parent=1 // pred_check
      _
    $region3: #{just_mpnn_forward.1} parent=1 // pred_check_branch
      %33 = sbr.rel (0) target = $region5
    $region4: #{just_mpnn_forward.1} parent=1 // pred_region
      _
    $region5: #{just_mpnn_forward.1} parent=1 // pred_fallthru
      _
    // Predicated region
    $region6: #{just_mpnn_forward.1} parent=1 // pred_check
      _
    $region7: #{just_mpnn_forward.1} parent=1 // pred_check_branch
      %35 = sbr.rel (0) target = $region9
    $region8: #{just_mpnn_forward.1} parent=1 // pred_region
      %s37 = ssub.s32 256, 256
      %38 = vsyncadd [#allocation3], %s37
      %s39 = sshll.u32 [#allocation2], 4
      %s40 = int_to_ptr.vmem [resolvable:$true] %s39
      %45 = dma.hbm_to_vmem [thread:$0]  %s1, 256, %s40, [#allocation3], 64, 64, 4
    $region9: #{just_mpnn_forward.1} parent=1 // pred_fallthru
      _
    // Predicated region
    $region10: #{just_mpnn_forward.1} parent=1 // pred_check
      _
    $region11: #{just_mpnn_forward.1} parent=1 // pred_check_branch
      %47 = sbr.rel (0) target = $region13
    $region12: #{just_mpnn_forward.1} parent=1 // pred_region
      %s49 = ssub.s32 64, 64
      %50 = vsyncadd [#allocation5], %s49
      %s52 = sshll.u32 [#allocation4], 4
      %s53 = int_to_ptr.vmem [resolvable:$true] %s52
      %55 = dma.hbm_to_vmem [thread:$0]  %s2, 64, %s53, [#allocation5]
    $region13: #{just_mpnn_forward.1} parent=1 // pred_fallthru
      _
    // Predicated region
    $region14: #{just_mpnn_forward.1} parent=1 // pred_check
      _
    $region15: #{just_mpnn_forward.1} parent=1 // pred_check_branch
      %57 = sbr.rel (0) target = $region17
    $region16: #{just_mpnn_forward.1} parent=1 // pred_region
      %s59 = ssub.s32 128, 128
      %60 = vsyncadd [#allocation5], %s59
      %s61 = sshll.u32 [#allocation6], 4
      %s62 = int_to_ptr.vmem [resolvable:$true] %s61
      %67 = dma.hbm_to_vmem [thread:$0]  %s3, 128, %s62, [#allocation5], 64, 64, 4
    $region17: #{just_mpnn_forward.1} parent=1 // pred_fallthru
      _
    // Predicated region
    $region18: #{just_mpnn_forward.1} parent=1 // pred_check
      _
    $region19: #{just_mpnn_forward.1} parent=1 // pred_check_branch
      %69 = sbr.rel (0) target = $region21
    $region20: #{just_mpnn_forward.1} parent=1 // pred_region
      %s71 = ssub.s32 128, 128
      %72 = vsyncadd [#allocation8], %s71
      %s73 = sshll.u32 [#allocation7], 4
      %s74 = int_to_ptr.vmem [resolvable:$true] %s73
      %79 = dma.hbm_to_vmem [thread:$0]  %s4, 128, %s74, [#allocation8], 64, 64, 4
    $region21: #{just_mpnn_forward.1} parent=1 // pred_fallthru
      _
    // Predicated region
    $region22: #{just_mpnn_forward.1} parent=1 // pred_check
      _
    $region23: #{just_mpnn_forward.1} parent=1 // pred_check_branch
      %81 = sbr.rel (0) target = $region25
    $region24: #{just_mpnn_forward.1} parent=1 // pred_region
      %s83 = ssub.s32 64, 64
      %84 = vsyncadd [#allocation8], %s83
      %s86 = sshll.u32 [#allocation9], 4
      %s87 = int_to_ptr.vmem [resolvable:$true] %s86
      %89 = dma.hbm_to_vmem [thread:$0]  %s5, 64, %s87, [#allocation8]
    $region25: #{just_mpnn_forward.1} parent=1 // pred_fallthru
      _
    // Predicated region
    $region26: #{just_mpnn_forward.1} parent=1 // pred_check
      _
    $region27: #{just_mpnn_forward.1} parent=1 // pred_check_branch
      %91 = sbr.rel (0) target = $region29
    $region28: #{just_mpnn_forward.1} parent=1 // pred_region
      %s93 = ssub.s32 128, 128
      %94 = vsyncadd [#allocation11], %s93
      %s96 = sshll.u32 [#allocation10], 4
      %s97 = int_to_ptr.vmem [resolvable:$true] %s96
      %99 = dma.hbm_to_vmem [thread:$0]  %s6, 128, %s97, [#allocation11]
    $region29: #{just_mpnn_forward.1} parent=1 // pred_fallthru
      _
    // Predicated region
    $region30: #{just_mpnn_forward.1} parent=1 // pred_check
      _
    $region31: #{just_mpnn_forward.1} parent=1 // pred_check_branch
      %101 = sbr.rel (0) target = $region33
    $region32: #{just_mpnn_forward.1} parent=1 // pred_region
      %s103 = ssub.s32 128, 128
      %104 = vsyncadd [#allocation11], %s103
      %s105 = sshll.u32 [#allocation12], 4
      %s106 = int_to_ptr.vmem [resolvable:$true] %s105
      %111 = dma.hbm_to_vmem [thread:$0]  %s7, 128, %s106, [#allocation11], 64, 64, 4
    $region33: #{just_mpnn_forward.1} parent=1 // pred_fallthru
      _
    // Predicated region
    $region34: #{just_mpnn_forward.1} parent=1 // pred_check
      _
    $region35: #{just_mpnn_forward.1} parent=1 // pred_check_branch
      %113 = sbr.rel (0) target = $region37
    $region36: #{just_mpnn_forward.1} parent=1 // pred_region
      _
    $region37: #{just_mpnn_forward.1} parent=1 // pred_fallthru
      _
    // Predicated region
    $region38: #{just_mpnn_forward.1} parent=1 // pred_check
      _
    $region39: #{just_mpnn_forward.1} parent=1 // pred_check_branch
      %115 = sbr.rel (0) target = $region41
    $region40: #{just_mpnn_forward.1} parent=1 // pred_region
      _
    $region41: #{just_mpnn_forward.1} parent=1 // pred_fallthru
      _
    // Predicated region
    $region42: #{just_mpnn_forward.1} parent=1 // pred_check
      _
    $region43: #{just_mpnn_forward.1} parent=1 // pred_check_branch
      %117 = sbr.rel (0) target = $region45
    $region44: #{just_mpnn_forward.1} parent=1 // pred_region
      %s119 = ssub.s32 128, 128
      %120 = vsyncadd [#allocation14], %s119
      %s121 = sshll.u32 [#allocation13], 4
      %s122 = int_to_ptr.vmem [resolvable:$true] %s121
      %127 = dma.hbm_to_vmem [thread:$0]  %s10, 128, %s122, [#allocation14], 64, 64, 4
    $region45: #{just_mpnn_forward.1} parent=1 // pred_fallthru
      _
    // Predicated region
    $region46: #{just_mpnn_forward.1} parent=1 // pred_check
      _
    $region47: #{just_mpnn_forward.1} parent=1 // pred_check_branch
      %129 = sbr.rel (0) target = $region49
    $region48: #{just_mpnn_forward.1} parent=1 // pred_region
      %s131 = ssub.s32 512, 512
      %132 = vsyncadd [#allocation14], %s131
      %s133 = sshll.u32 [#allocation15], 4
      %s134 = int_to_ptr.vmem [resolvable:$true] %s133
      %139 = dma.hbm_to_vmem [thread:$0]  %s11, 512, %s134, [#allocation14], 64, 64, 4
    $region49: #{just_mpnn_forward.1} parent=1 // pred_fallthru
      _
    // Predicated region
    $region50: #{just_mpnn_forward.1} parent=1 // pred_check
      _
    $region51: #{just_mpnn_forward.1} parent=1 // pred_check_branch
      %141 = sbr.rel (0) target = $region53
    $region52: #{just_mpnn_forward.1} parent=1 // pred_region
      %s143 = ssub.s32 512, 512
      %144 = vsyncadd [#allocation17], %s143
      %s145 = sshll.u32 [#allocation16], 4
      %s146 = int_to_ptr.vmem [resolvable:$true] %s145
      %151 = dma.hbm_to_vmem [thread:$0]  %s12, 512, %s146, [#allocation17], 64, 64, 4
    $region53: #{just_mpnn_forward.1} parent=1 // pred_fallthru
      _
    // Predicated region
    $region54: #{just_mpnn_forward.1} parent=1 // pred_check
      _
    $region55: #{just_mpnn_forward.1} parent=1 // pred_check_branch
      %153 = sbr.rel (0) target = $region57
    $region56: #{just_mpnn_forward.1} parent=1 // pred_region
      _
    $region57: #{just_mpnn_forward.1} parent=1 // pred_fallthru
      _
    // Predicated region
    $region58: #{just_mpnn_forward.1} parent=1 // pred_check
      _
    $region59: #{just_mpnn_forward.1} parent=1 // pred_check_branch
      %155 = sbr.rel (0) target = $region61
    $region60: #{just_mpnn_forward.1} parent=1 // pred_region
      _
    $region61: #{just_mpnn_forward.1} parent=1 // pred_fallthru
      _
    // Predicated region
    $region62: #{just_mpnn_forward.1} parent=1 // pred_check
      _
    $region63: #{just_mpnn_forward.1} parent=1 // pred_check_branch
      %157 = sbr.rel (0) target = $region65
    $region64: #{just_mpnn_forward.1} parent=1 // pred_region
      _
    $region65: #{just_mpnn_forward.1} parent=1 // pred_fallthru
      _
    // Predicated region
    $region66: #{just_mpnn_forward.1} parent=1 // pred_check
      _
    $region67: #{just_mpnn_forward.1} parent=1 // pred_check_branch
      %159 = sbr.rel (0) target = $region69
    $region68: #{just_mpnn_forward.1} parent=1 // pred_region
      _
    $region69: #{just_mpnn_forward.1} parent=1 // pred_fallthru
      _
    // Predicated region
    $region70: #{just_mpnn_forward.1} parent=1 // pred_check
      _
    $region71: #{just_mpnn_forward.1} parent=1 // pred_check_branch
      %161 = sbr.rel (0) target = $region73
    $region72: #{just_mpnn_forward.1} parent=1 // pred_region
      _
    $region73: #{just_mpnn_forward.1} parent=1 // pred_fallthru
      _
    // Predicated region
    $region74: #{just_mpnn_forward.1} parent=1 // pred_check
      _
    $region75: #{just_mpnn_forward.1} parent=1 // pred_check_branch
      %163 = sbr.rel (0) target = $region77
    $region76: #{just_mpnn_forward.1} parent=1 // pred_region
      _
    $region77: #{just_mpnn_forward.1} parent=1 // pred_fallthru
      _
    // Predicated region
    $region78: #{just_mpnn_forward.1} parent=1 // pred_check
      _
    $region79: #{just_mpnn_forward.1} parent=1 // pred_check_branch
      %165 = sbr.rel (0) target = $region81
    $region80: #{just_mpnn_forward.1} parent=1 // pred_region
      %s167 = ssub.s32 256, 256
      %168 = vsyncadd [#allocation17], %s167
      %s169 = sshll.u32 [#allocation18], 4
      %s170 = int_to_ptr.vmem [resolvable:$true] %s169
      %175 = dma.hbm_to_vmem [thread:$0]  %s19, 256, %s170, [#allocation17], 64, 64, 4
    $region81: #{just_mpnn_forward.1} parent=1 // pred_fallthru
      _
    // Predicated region
    $region82: #{just_mpnn_forward.1} parent=1 // pred_check
      _
    $region83: #{just_mpnn_forward.1} parent=1 // pred_check_branch
      %177 = sbr.rel (0) target = $region85
    $region84: #{just_mpnn_forward.1} parent=1 // pred_region
      _
    $region85: #{just_mpnn_forward.1} parent=1 // pred_fallthru
      _
    // Predicated region
    $region86: #{just_mpnn_forward.1} parent=1 // pred_check
      _
    $region87: #{just_mpnn_forward.1} parent=1 // pred_check_branch
      %179 = sbr.rel (0) target = $region89
    $region88: #{just_mpnn_forward.1} parent=1 // pred_region
      %180 = dma.done [#allocation3], 256
    $region89: #{just_mpnn_forward.1} parent=1 // pred_fallthru
      _
    // Predicated region
    $region90: #{just_mpnn_forward.1} parent=1 // pred_check
      _
    $region91: #{just_mpnn_forward.1} parent=1 // pred_check_branch
      %182 = sbr.rel (0) target = $region93
    $region92: #{just_mpnn_forward.1} parent=1 // pred_region
      %183 = dma.done [#allocation5], 64
    $region93: #{just_mpnn_forward.1} parent=1 // pred_fallthru
      _
    // Predicated region
    $region94: #{just_mpnn_forward.1} parent=1 // pred_check
      _
    $region95: #{just_mpnn_forward.1} parent=1 // pred_check_branch
      %185 = sbr.rel (0) target = $region97
    $region96: #{just_mpnn_forward.1} parent=1 // pred_region
      %186 = dma.done [#allocation5], 128
    $region97: #{just_mpnn_forward.1} parent=1 // pred_fallthru
      _
    // Predicated region
    $region98: #{just_mpnn_forward.1} parent=1 // pred_check
      _
    $region99: #{just_mpnn_forward.1} parent=1 // pred_check_branch
      %188 = sbr.rel (0) target = $region101
    $region100: #{just_mpnn_forward.1} parent=1 // pred_region
      %189 = dma.done [#allocation8], 128
    $region101: #{just_mpnn_forward.1} parent=1 // pred_fallthru
      _
    // Predicated region
    $region102: #{just_mpnn_forward.1} parent=1 // pred_check
      _
    $region103: #{just_mpnn_forward.1} parent=1 // pred_check_branch
      %191 = sbr.rel (0) target = $region105
    $region104: #{just_mpnn_forward.1} parent=1 // pred_region
      %192 = dma.done [#allocation8], 64
    $region105: #{just_mpnn_forward.1} parent=1 // pred_fallthru
      _
    // Predicated region
    $region106: #{just_mpnn_forward.1} parent=1 // pred_check
      _
    $region107: #{just_mpnn_forward.1} parent=1 // pred_check_branch
      %194 = sbr.rel (0) target = $region109
    $region108: #{just_mpnn_forward.1} parent=1 // pred_region
      %195 = dma.done [#allocation11], 128
    $region109: #{just_mpnn_forward.1} parent=1 // pred_fallthru
      _
    // Predicated region
    $region110: #{just_mpnn_forward.1} parent=1 // pred_check
      _
    $region111: #{just_mpnn_forward.1} parent=1 // pred_check_branch
      %197 = sbr.rel (0) target = $region113
    $region112: #{just_mpnn_forward.1} parent=1 // pred_region
      %198 = dma.done [#allocation11], 128
    $region113: #{just_mpnn_forward.1} parent=1 // pred_fallthru
      _
    // Predicated region
    $region114: #{just_mpnn_forward.1} parent=1 // pred_check
      _
    $region115: #{just_mpnn_forward.1} parent=1 // pred_check_branch
      %200 = sbr.rel (0) target = $region117
    $region116: #{just_mpnn_forward.1} parent=1 // pred_region
      %201 = dma.done [#allocation14], 128
    $region117: #{just_mpnn_forward.1} parent=1 // pred_fallthru
      _
    // Predicated region
    $region118: #{just_mpnn_forward.1} parent=1 // pred_check
      _
    $region119: #{just_mpnn_forward.1} parent=1 // pred_check_branch
      %203 = sbr.rel (0) target = $region121
    $region120: #{just_mpnn_forward.1} parent=1 // pred_region
      %204 = dma.done [#allocation14], 512
    $region121: #{just_mpnn_forward.1} parent=1 // pred_fallthru
      _
    // Predicated region
    $region122: #{just_mpnn_forward.1} parent=1 // pred_check
      _
    $region123: #{just_mpnn_forward.1} parent=1 // pred_check_branch
      %206 = sbr.rel (0) target = $region125
    $region124: #{just_mpnn_forward.1} parent=1 // pred_region
      %207 = dma.done [#allocation17], 512
    $region125: #{just_mpnn_forward.1} parent=1 // pred_fallthru
      _
    // Predicated region
    $region126: #{just_mpnn_forward.1} parent=1 // pred_check
      _
    $region127: #{just_mpnn_forward.1} parent=1 // pred_check_branch
      %209 = sbr.rel (0) target = $region129
    $region128: #{just_mpnn_forward.1} parent=1 // pred_region
      %210 = dma.done [#allocation17], 256
    $region129: #{just_mpnn_forward.1} parent=1 // pred_fallthru
      _
    %v212 = vld [vmem:[%s0] sm:$0xf]
    %v213 = vld [vmem:[%s0 + $0x4] sm:$0xf]
    %v214 = vld [vmem:[%s0 + $0x8] sm:$0xf]
    %v215 = vld [vmem:[%s0 + $0xc] sm:$0x7]
    %v216 = vld [vmem:[#allocation2] sm:$0xf]
    %v217 = vld [vmem:[#allocation2 + $0x4] sm:$0xf]
    %v218 = vld [vmem:[#allocation2 + $0x8] sm:$0xf]
    %v219 = vld [vmem:[#allocation2 + $0xc] sm:$0x7]
    %v220 = vld [vmem:[#allocation4] sm:$0x7]
    %v221 = vld [vmem:[#allocation12] sm:$0xf]
    %v222 = vld [vmem:[#allocation12 + $0x4] sm:$0xf]
    %v223 = vld [vmem:[%s8] sm:$0xf]
    %v224 = vld [vmem:[%s8 + $0x4] sm:$0xf]
    %v225 = vld [vmem:[%s8 + $0x8] sm:$0xf]
    %v226 = vld [vmem:[%s8 + $0xc] sm:$0xf]
    %v227 = vld [vmem:[%s8 + $0x10] sm:$0xf]
    %v228 = vld [vmem:[%s8 + $0x14] sm:$0xf]
    %v229 = vld [vmem:[%s8 + $0x18] sm:$0xf]
    %v230 = vld [vmem:[%s8 + $0x1c] sm:$0xf]
    %v231 = vld [vmem:[%s9] sm:$0xf]
    %v232 = vld [vmem:[%s9 + $0x4] sm:$0xf]
    %v233 = vld [vmem:[%s9 + $0x8] sm:$0xf]
    %v234 = vld [vmem:[%s9 + $0xc] sm:$0xf]
    %v235 = vld [vmem:[%s9 + $0x10] sm:$0xf]
    %v236 = vld [vmem:[%s9 + $0x14] sm:$0xf]
    %v237 = vld [vmem:[%s9 + $0x18] sm:$0xf]
    %v238 = vld [vmem:[%s9 + $0x1c] sm:$0xf]
    %v243 = vunpack.c.l.b16 %v212
    %v244 = vunpack.c.l.b16 %v213
    %v245 = vunpack.c.l.b16 %v214
    %v246 = vunpack.c.l.b16 %v215
    %v247 = vpack.c.b16 %v244, %v243
    %v248 = vpack.c.b16 %v246, %v245
    %v251 = vunpack.c.l.b16 %v221
    %v252 = vunpack.c.l.b16 %v222
    %v253 = vpack.c.b16 %v252, %v251
    %vm255 = vcmask 130048
    %v257 = vsel %vm255, %v247, 0
    %v260 = vsel %vm255, %v248, 0
    %262 = vmatprep.subr.bf16.mxu0 0
    %263 = vmatpush1.bf16.msra.mxu0 0
    %264 = vmatprep.subr.bf16.mxu0 0
    %265 = vmatpush1.bf16.msra.mxu0 0
    %266 = vmatprep.subr.bf16.mxu0 0
    %267 = vmatpush1.bf16.msra.mxu0 0
    %268 = vmatprep.subr.bf16.mxu0 0
    %269 = vmatpush1.bf16.msra.mxu0 0
    %270 = vmatprep.subr.bf16.mxu0 0
    %271 = vmatpush1.bf16.msra.mxu0 0
    %272 = vmatprep.subr.bf16.mxu0 0
    %273 = vmatpush1.bf16.msra.mxu0 0
    %274 = vmatprep.subr.bf16.mxu0 0
    %275 = vmatpush1.bf16.msra.mxu0 0
    %276 = vmatprep.subr.bf16.mxu0 0
    %277 = vmatpush1.bf16.msra.mxu0 %v253
    %278 = vmatprep.subr.bf16.mxu0 0
    %279 = vmatpush2.bf16.msra.mxu0 0
    %280 = vmatprep.subr.bf16.mxu0 0
    %281 = vmatpush2.bf16.msra.mxu0 0
    %282 = vmatprep.subr.bf16.mxu0 0
    %283 = vmatpush2.bf16.msra.mxu0 0
    %284 = vmatprep.subr.bf16.mxu0 0
    %285 = vmatpush2.bf16.msra.mxu0 0
    %286 = vmatprep.subr.bf16.mxu0 0
    %287 = vmatpush2.bf16.msra.mxu0 0
    %288 = vmatprep.subr.bf16.mxu0 0
    %289 = vmatpush2.bf16.msra.mxu0 0
    %290 = vmatprep.subr.bf16.mxu0 0
    %291 = vmatpush2.bf16.msra.mxu0 0
    %292 = vmatprep.subr.bf16.mxu0 0
    %293 = vmatpush2.bf16.msra.mxu0 0
    %294 = vmatprep.mubr.bf16.mxu0 0
    %295 = vmatmul.mubr.bf16.gmra.mxu0 %v257
    %v296 = vpop.f32.mrf.mxu0
    %v297 = vadd.f32 0.0, %v296
    %v298 = vpop.f32.mrf.mxu0
    %v299 = vpop.f32.mrf.mxu0
    %v300 = vadd.f32 0.0, %v299
    %v301 = vpop.f32.mrf.mxu0
    %302 = vmatprep.mubr.bf16.mxu0 0
    %303 = vmatmul.mubr.bf16.gmra.mxu0 %v260
    %v304 = vpop.f32.mrf.mxu0
    %v305 = vadd.f32 0.0, %v304
    %v306 = vpop.f32.mrf.mxu0
    %v307 = vpop.f32.mrf.mxu0
    %v308 = vadd.f32 0.0, %v307
    %v309 = vpop.f32.mrf.mxu0
    %310 = vdwg.mxu0
    %v311 = vmax.f32 %v297, 0.0
    %v312 = vmax.f32 %v300, 0.0
    %v313 = vmax.f32 %v305, 0.0
    %v314 = vmax.f32 %v308, 0.0
    %v315 = vpack.c.bf16 %v312, %v311
    %v316 = vpack.c.bf16 %v314, %v313
    %v321 = vunpack.c.l.b16 %v216
    %v322 = vunpack.c.l.b16 %v217
    %v323 = vunpack.c.l.b16 %v218
    %v324 = vunpack.c.l.b16 %v219
    %v325 = vpack.c.b16 %v322, %v321
    %v326 = vpack.c.b16 %v324, %v323
    %vm327 = vcmask 244736
    %v329 = vsel %vm327, %v325, 0
    %v332 = vsel %vm327, %v326, 0
    %vm334 = vcmask 1046528
    %v336 = vsel %vm334, %v316, 0
    %338 = vmatprep.subr.bf16.mxu0 0
    %339 = vmatpush1.bf16.msra.mxu0 0
    %340 = vmatprep.subr.bf16.mxu0 0
    %341 = vmatpush1.bf16.msra.mxu0 0
    %342 = vmatprep.subr.bf16.mxu0 0
    %343 = vmatpush1.bf16.msra.mxu0 0
    %344 = vmatprep.subr.bf16.mxu0 0
    %345 = vmatpush1.bf16.msra.mxu0 0
    %346 = vmatprep.subr.bf16.mxu0 0
    %347 = vmatpush1.bf16.msra.mxu0 0
    %348 = vmatprep.subr.bf16.mxu0 0
    %349 = vmatpush1.bf16.msra.mxu0 0
    %350 = vmatprep.subr.bf16.mxu0 0
    %351 = vmatpush1.bf16.msra.mxu0 %v336
    %352 = vmatprep.subr.bf16.mxu0 0
    %353 = vmatpush1.bf16.msra.mxu0 %v315
    %354 = vmatprep.subr.bf16.mxu0 0
    %355 = vmatpush2.bf16.msra.mxu0 0
    %356 = vmatprep.subr.bf16.mxu0 0
    %357 = vmatpush2.bf16.msra.mxu0 0
    %358 = vmatprep.subr.bf16.mxu0 0
    %359 = vmatpush2.bf16.msra.mxu0 0
    %360 = vmatprep.subr.bf16.mxu0 0
    %361 = vmatpush2.bf16.msra.mxu0 0
    %362 = vmatprep.subr.bf16.mxu0 0
    %363 = vmatpush2.bf16.msra.mxu0 0
    %364 = vmatprep.subr.bf16.mxu0 0
    %365 = vmatpush2.bf16.msra.mxu0 0
    %366 = vmatprep.subr.bf16.mxu0 0
    %367 = vmatpush2.bf16.msra.mxu0 0
    %368 = vmatprep.subr.bf16.mxu0 0
    %369 = vmatpush2.bf16.msra.mxu0 0
    %370 = vmatprep.mubr.bf16.mxu0 0
    %371 = vmatmul.mubr.bf16.gmra.mxu0 %v329
    %v372 = vpop.f32.mrf.mxu0
    %v373 = vadd.f32 0.0, %v372
    %v374 = vpop.f32.mrf.mxu0
    %v375 = vpop.f32.mrf.mxu0
    %v376 = vadd.f32 0.0, %v375
    %v377 = vpop.f32.mrf.mxu0
    %378 = vmatprep.mubr.bf16.mxu0 0
    %379 = vmatmul.mubr.bf16.gmra.mxu0 %v332
    %v380 = vpop.f32.mrf.mxu0
    %v381 = vadd.f32 0.0, %v380
    %v382 = vpop.f32.mrf.mxu0
    %v383 = vpop.f32.mrf.mxu0
    %v384 = vadd.f32 0.0, %v383
    %v385 = vpop.f32.mrf.mxu0
    %386 = vdwg.mxu0
    %v387 = vpack.c.bf16 %v376, %v373
    %v388 = vpack.c.bf16 %v384, %v381
    %v397 = vunpack.c.l.b16 %v223
    %v398 = vunpack.c.l.b16 %v224
    %v399 = vunpack.c.l.b16 %v225
    %v400 = vunpack.c.l.b16 %v226
    %v401 = vunpack.c.l.b16 %v227
    %v402 = vunpack.c.l.b16 %v228
    %v403 = vunpack.c.l.b16 %v229
    %v404 = vunpack.c.l.b16 %v230
    %v405 = vpack.c.b16 %v398, %v397
    %v406 = vpack.c.b16 %v400, %v399
    %v407 = vpack.c.b16 %v402, %v401
    %v408 = vpack.c.b16 %v404, %v403
    %vm413 = vcmask 523264
    %v415 = vsel %vm413, %v387, 0
    %v418 = vsel %vm413, %v388, 0
    %420 = vmatprep.subr.bf16.mxu0 0
    %421 = vmatpush1.bf16.msra.mxu0 0
    %422 = vmatprep.subr.bf16.mxu0 0
    %423 = vmatpush1.bf16.msra.mxu0 0
    %424 = vmatprep.subr.bf16.mxu0 0
    %425 = vmatpush1.bf16.msra.mxu0 0
    %426 = vmatprep.subr.bf16.mxu0 0
    %427 = vmatpush1.bf16.msra.mxu0 0
    %428 = vmatprep.subr.bf16.mxu0 0
    %429 = vmatpush1.bf16.msra.mxu0 %v408
    %430 = vmatprep.subr.bf16.mxu0 0
    %431 = vmatpush1.bf16.msra.mxu0 %v407
    %432 = vmatprep.subr.bf16.mxu0 0
    %433 = vmatpush1.bf16.msra.mxu0 %v406
    %434 = vmatprep.subr.bf16.mxu0 0
    %435 = vmatpush1.bf16.msra.mxu0 %v405
    %436 = vmatprep.subr.bf16.mxu0 0
    %437 = vmatpush2.bf16.msra.mxu0 0
    %438 = vmatprep.subr.bf16.mxu0 0
    %439 = vmatpush2.bf16.msra.mxu0 0
    %440 = vmatprep.subr.bf16.mxu0 0
    %441 = vmatpush2.bf16.msra.mxu0 0
    %442 = vmatprep.subr.bf16.mxu0 0
    %443 = vmatpush2.bf16.msra.mxu0 0
    %444 = vmatprep.subr.bf16.mxu0 0
    %445 = vmatpush2.bf16.msra.mxu0 0
    %446 = vmatprep.subr.bf16.mxu0 0
    %447 = vmatpush2.bf16.msra.mxu0 0
    %448 = vmatprep.subr.bf16.mxu0 0
    %449 = vmatpush2.bf16.msra.mxu0 0
    %450 = vmatprep.subr.bf16.mxu0 0
    %451 = vmatpush2.bf16.msra.mxu0 0
    %452 = vmatprep.mubr.bf16.mxu0 0
    %453 = vmatmul.mubr.bf16.gmra.mxu0 %v415
    %v454 = vpop.f32.mrf.mxu0
    %v455 = vadd.f32 0.0, %v454
    %v456 = vpop.f32.mrf.mxu0
    %v457 = vpop.f32.mrf.mxu0
    %v458 = vadd.f32 0.0, %v457
    %v459 = vpop.f32.mrf.mxu0
    %460 = vmatprep.mubr.bf16.mxu0 0
    %461 = vmatmul.mubr.bf16.gmra.mxu0 %v418
    %v462 = vpop.f32.mrf.mxu0
    %v463 = vadd.f32 0.0, %v462
    %v464 = vpop.f32.mrf.mxu0
    %v465 = vpop.f32.mrf.mxu0
    %v466 = vadd.f32 0.0, %v465
    %v467 = vpop.f32.mrf.mxu0
    %468 = vdwg.mxu0
    %v469 = vadd.f32 %v311, %v455
    %v470 = vadd.f32 %v312, %v458
    %v471 = vadd.f32 %v313, %v463
    %v472 = vadd.f32 %v314, %v466
    %v473 = vmax.f32 %v469, 0.0
    %v474 = vmax.f32 %v470, 0.0
    %v475 = vmax.f32 %v471, 0.0
    %v476 = vmax.f32 %v472, 0.0
    %v477 = vpack.c.bf16 %v474, %v473
    %v478 = vpack.c.bf16 %v476, %v475
    %v480 = vsel %vm334, %v478, 0
    %482 = vmatprep.subr.bf16.mxu0 0
    %483 = vmatpush1.bf16.msra.mxu0 0
    %484 = vmatprep.subr.bf16.mxu0 0
    %485 = vmatpush1.bf16.msra.mxu0 0
    %486 = vmatprep.subr.bf16.mxu0 0
    %487 = vmatpush1.bf16.msra.mxu0 0
    %488 = vmatprep.subr.bf16.mxu0 0
    %489 = vmatpush1.bf16.msra.mxu0 0
    %490 = vmatprep.subr.bf16.mxu0 0
    %491 = vmatpush1.bf16.msra.mxu0 0
    %492 = vmatprep.subr.bf16.mxu0 0
    %493 = vmatpush1.bf16.msra.mxu0 0
    %494 = vmatprep.subr.bf16.mxu0 0
    %495 = vmatpush1.bf16.msra.mxu0 %v480
    %496 = vmatprep.subr.bf16.mxu0 0
    %497 = vmatpush1.bf16.msra.mxu0 %v477
    %498 = vmatprep.subr.bf16.mxu0 0
    %499 = vmatpush2.bf16.msra.mxu0 0
    %500 = vmatprep.subr.bf16.mxu0 0
    %501 = vmatpush2.bf16.msra.mxu0 0
    %502 = vmatprep.subr.bf16.mxu0 0
    %503 = vmatpush2.bf16.msra.mxu0 0
    %504 = vmatprep.subr.bf16.mxu0 0
    %505 = vmatpush2.bf16.msra.mxu0 0
    %506 = vmatprep.subr.bf16.mxu0 0
    %507 = vmatpush2.bf16.msra.mxu0 0
    %508 = vmatprep.subr.bf16.mxu0 0
    %509 = vmatpush2.bf16.msra.mxu0 0
    %510 = vmatprep.subr.bf16.mxu0 0
    %511 = vmatpush2.bf16.msra.mxu0 0
    %512 = vmatprep.subr.bf16.mxu0 0
    %513 = vmatpush2.bf16.msra.mxu0 0
    %514 = vmatprep.mubr.bf16.mxu0 0
    %515 = vmatmul.mubr.bf16.gmra.mxu0 %v329
    %v516 = vpop.f32.mrf.mxu0
    %v517 = vadd.f32 0.0, %v516
    %v518 = vpop.f32.mrf.mxu0
    %v519 = vpop.f32.mrf.mxu0
    %v520 = vadd.f32 0.0, %v519
    %v521 = vpop.f32.mrf.mxu0
    %522 = vmatprep.mubr.bf16.mxu0 0
    %523 = vmatmul.mubr.bf16.gmra.mxu0 %v332
    %v524 = vpop.f32.mrf.mxu0
    %v525 = vadd.f32 0.0, %v524
    %v526 = vpop.f32.mrf.mxu0
    %v527 = vpop.f32.mrf.mxu0
    %v528 = vadd.f32 0.0, %v527
    %v529 = vpop.f32.mrf.mxu0
    %530 = vdwg.mxu0
    %v531 = vpack.c.bf16 %v520, %v517
    %v532 = vpack.c.bf16 %v528, %v525
    %v534 = vsel %vm413, %v531, 0
    %v537 = vsel %vm413, %v532, 0
    %539 = vmatprep.subr.bf16.mxu0 0
    %540 = vmatpush1.bf16.msra.mxu0 0
    %541 = vmatprep.subr.bf16.mxu0 0
    %542 = vmatpush1.bf16.msra.mxu0 0
    %543 = vmatprep.subr.bf16.mxu0 0
    %544 = vmatpush1.bf16.msra.mxu0 0
    %545 = vmatprep.subr.bf16.mxu0 0
    %546 = vmatpush1.bf16.msra.mxu0 0
    %547 = vmatprep.subr.bf16.mxu0 0
    %548 = vmatpush1.bf16.msra.mxu0 %v408
    %549 = vmatprep.subr.bf16.mxu0 0
    %550 = vmatpush1.bf16.msra.mxu0 %v407
    %551 = vmatprep.subr.bf16.mxu0 0
    %552 = vmatpush1.bf16.msra.mxu0 %v406
    %553 = vmatprep.subr.bf16.mxu0 0
    %554 = vmatpush1.bf16.msra.mxu0 %v405
    %555 = vmatprep.subr.bf16.mxu0 0
    %556 = vmatpush2.bf16.msra.mxu0 0
    %557 = vmatprep.subr.bf16.mxu0 0
    %558 = vmatpush2.bf16.msra.mxu0 0
    %559 = vmatprep.subr.bf16.mxu0 0
    %560 = vmatpush2.bf16.msra.mxu0 0
    %561 = vmatprep.subr.bf16.mxu0 0
    %562 = vmatpush2.bf16.msra.mxu0 0
    %563 = vmatprep.subr.bf16.mxu0 0
    %564 = vmatpush2.bf16.msra.mxu0 0
    %565 = vmatprep.subr.bf16.mxu0 0
    %566 = vmatpush2.bf16.msra.mxu0 0
    %567 = vmatprep.subr.bf16.mxu0 0
    %568 = vmatpush2.bf16.msra.mxu0 0
    %569 = vmatprep.subr.bf16.mxu0 0
    %570 = vmatpush2.bf16.msra.mxu0 0
    %571 = vmatprep.mubr.bf16.mxu0 0
    %572 = vmatmul.mubr.bf16.gmra.mxu0 %v534
    %v573 = vpop.f32.mrf.mxu0
    %v574 = vadd.f32 0.0, %v573
    %v575 = vpop.f32.mrf.mxu0
    %v576 = vpop.f32.mrf.mxu0
    %v577 = vadd.f32 0.0, %v576
    %v578 = vpop.f32.mrf.mxu0
    %579 = vmatprep.mubr.bf16.mxu0 0
    %580 = vmatmul.mubr.bf16.gmra.mxu0 %v537
    %v581 = vpop.f32.mrf.mxu0
    %v582 = vadd.f32 0.0, %v581
    %v583 = vpop.f32.mrf.mxu0
    %v584 = vpop.f32.mrf.mxu0
    %v585 = vadd.f32 0.0, %v584
    %v586 = vpop.f32.mrf.mxu0
    %587 = vdwg.mxu0
    %v588 = vadd.f32 %v311, %v574
    %v589 = vadd.f32 %v312, %v577
    %v590 = vadd.f32 %v313, %v582
    %v591 = vadd.f32 %v314, %v585
    %v592 = vmax.f32 %v588, 0.0
    %v593 = vmax.f32 %v589, 0.0
    %v594 = vmax.f32 %v590, 0.0
    %v595 = vmax.f32 %v591, 0.0
    %v596 = vpack.c.bf16 %v593, %v592
    %v597 = vpack.c.bf16 %v595, %v594
    %v599 = vsel %vm334, %v597, 0
    %601 = vmatprep.subr.bf16.mxu0 0
    %602 = vmatpush1.bf16.msra.mxu0 0
    %603 = vmatprep.subr.bf16.mxu0 0
    %604 = vmatpush1.bf16.msra.mxu0 0
    %605 = vmatprep.subr.bf16.mxu0 0
    %606 = vmatpush1.bf16.msra.mxu0 0
    %607 = vmatprep.subr.bf16.mxu0 0
    %608 = vmatpush1.bf16.msra.mxu0 0
    %609 = vmatprep.subr.bf16.mxu0 0
    %610 = vmatpush1.bf16.msra.mxu0 0
    %611 = vmatprep.subr.bf16.mxu0 0
    %612 = vmatpush1.bf16.msra.mxu0 0
    %613 = vmatprep.subr.bf16.mxu0 0
    %614 = vmatpush1.bf16.msra.mxu0 %v599
    %615 = vmatprep.subr.bf16.mxu0 0
    %616 = vmatpush1.bf16.msra.mxu0 %v596
    %617 = vmatprep.subr.bf16.mxu0 0
    %618 = vmatpush2.bf16.msra.mxu0 0
    %619 = vmatprep.subr.bf16.mxu0 0
    %620 = vmatpush2.bf16.msra.mxu0 0
    %621 = vmatprep.subr.bf16.mxu0 0
    %622 = vmatpush2.bf16.msra.mxu0 0
    %623 = vmatprep.subr.bf16.mxu0 0
    %624 = vmatpush2.bf16.msra.mxu0 0
    %625 = vmatprep.subr.bf16.mxu0 0
    %626 = vmatpush2.bf16.msra.mxu0 0
    %627 = vmatprep.subr.bf16.mxu0 0
    %628 = vmatpush2.bf16.msra.mxu0 0
    %629 = vmatprep.subr.bf16.mxu0 0
    %630 = vmatpush2.bf16.msra.mxu0 0
    %631 = vmatprep.subr.bf16.mxu0 0
    %632 = vmatpush2.bf16.msra.mxu0 0
    %633 = vmatprep.mubr.bf16.mxu0 0
    %634 = vmatmul.mubr.bf16.gmra.mxu0 %v329
    %v635 = vpop.f32.mrf.mxu0
    %v636 = vadd.f32 0.0, %v635
    %v637 = vpop.f32.mrf.mxu0
    %v638 = vpop.f32.mrf.mxu0
    %v639 = vadd.f32 0.0, %v638
    %v640 = vpop.f32.mrf.mxu0
    %641 = vmatprep.mubr.bf16.mxu0 0
    %642 = vmatmul.mubr.bf16.gmra.mxu0 %v332
    %v643 = vpop.f32.mrf.mxu0
    %v644 = vadd.f32 0.0, %v643
    %v645 = vpop.f32.mrf.mxu0
    %v646 = vpop.f32.mrf.mxu0
    %v647 = vadd.f32 0.0, %v646
    %v648 = vpop.f32.mrf.mxu0
    %649 = vdwg.mxu0
    %v650 = vpack.c.bf16 %v639, %v636
    %v651 = vpack.c.bf16 %v647, %v644
    %v653 = vsel %vm413, %v650, 0
    %v656 = vsel %vm413, %v651, 0
    %658 = vmatprep.subr.bf16.mxu0 0
    %659 = vmatpush1.bf16.msra.mxu0 0
    %660 = vmatprep.subr.bf16.mxu0 0
    %661 = vmatpush1.bf16.msra.mxu0 0
    %662 = vmatprep.subr.bf16.mxu0 0
    %663 = vmatpush1.bf16.msra.mxu0 0
    %664 = vmatprep.subr.bf16.mxu0 0
    %665 = vmatpush1.bf16.msra.mxu0 0
    %666 = vmatprep.subr.bf16.mxu0 0
    %667 = vmatpush1.bf16.msra.mxu0 %v408
    %668 = vmatprep.subr.bf16.mxu0 0
    %669 = vmatpush1.bf16.msra.mxu0 %v407
    %670 = vmatprep.subr.bf16.mxu0 0
    %671 = vmatpush1.bf16.msra.mxu0 %v406
    %672 = vmatprep.subr.bf16.mxu0 0
    %673 = vmatpush1.bf16.msra.mxu0 %v405
    %674 = vmatprep.subr.bf16.mxu0 0
    %675 = vmatpush2.bf16.msra.mxu0 0
    %676 = vmatprep.subr.bf16.mxu0 0
    %677 = vmatpush2.bf16.msra.mxu0 0
    %678 = vmatprep.subr.bf16.mxu0 0
    %679 = vmatpush2.bf16.msra.mxu0 0
    %680 = vmatprep.subr.bf16.mxu0 0
    %681 = vmatpush2.bf16.msra.mxu0 0
    %682 = vmatprep.subr.bf16.mxu0 0
    %683 = vmatpush2.bf16.msra.mxu0 0
    %684 = vmatprep.subr.bf16.mxu0 0
    %685 = vmatpush2.bf16.msra.mxu0 0
    %686 = vmatprep.subr.bf16.mxu0 0
    %687 = vmatpush2.bf16.msra.mxu0 0
    %688 = vmatprep.subr.bf16.mxu0 0
    %689 = vmatpush2.bf16.msra.mxu0 0
    %690 = vmatprep.mubr.bf16.mxu0 0
    %691 = vmatmul.mubr.bf16.gmra.mxu0 %v653
    %v692 = vpop.f32.mrf.mxu0
    %v693 = vadd.f32 0.0, %v692
    %v694 = vpop.f32.mrf.mxu0
    %v695 = vpop.f32.mrf.mxu0
    %v696 = vadd.f32 0.0, %v695
    %v697 = vpop.f32.mrf.mxu0
    %698 = vmatprep.mubr.bf16.mxu0 0
    %699 = vmatmul.mubr.bf16.gmra.mxu0 %v656
    %v700 = vpop.f32.mrf.mxu0
    %v701 = vadd.f32 0.0, %v700
    %v702 = vpop.f32.mrf.mxu0
    %v703 = vpop.f32.mrf.mxu0
    %v704 = vadd.f32 0.0, %v703
    %v705 = vpop.f32.mrf.mxu0
    %706 = vdwg.mxu0
    %v707 = vadd.f32 %v311, %v693
    %v708 = vadd.f32 %v312, %v696
    %v709 = vadd.f32 %v313, %v701
    %v710 = vadd.f32 %v314, %v704
    %v711 = vmax.f32 %v707, 0.0
    %v712 = vmax.f32 %v708, 0.0
    %v713 = vmax.f32 %v709, 0.0
    %v714 = vmax.f32 %v710, 0.0
    %v715 = vpack.c.bf16 %v712, %v711
    %v716 = vpack.c.bf16 %v714, %v713
    %v718 = vsel %vm327, %v220, 0
    %v721 = vsel %vm334, %v716, 0
    %723 = vmatprep.subr.bf16.mxu0 0
    %724 = vmatpush1.bf16.msra.mxu0 0
    %725 = vmatprep.subr.bf16.mxu0 0
    %726 = vmatpush1.bf16.msra.mxu0 0
    %727 = vmatprep.subr.bf16.mxu0 0
    %728 = vmatpush1.bf16.msra.mxu0 0
    %729 = vmatprep.subr.bf16.mxu0 0
    %730 = vmatpush1.bf16.msra.mxu0 0
    %731 = vmatprep.subr.bf16.mxu0 0
    %732 = vmatpush1.bf16.msra.mxu0 0
    %733 = vmatprep.subr.bf16.mxu0 0
    %734 = vmatpush1.bf16.msra.mxu0 0
    %735 = vmatprep.subr.bf16.mxu0 0
    %736 = vmatpush1.bf16.msra.mxu0 %v721
    %737 = vmatprep.subr.bf16.mxu0 0
    %738 = vmatpush1.bf16.msra.mxu0 %v715
    %739 = vmatprep.subr.bf16.mxu0 0
    %740 = vmatpush2.bf16.msra.mxu0 0
    %741 = vmatprep.subr.bf16.mxu0 0
    %742 = vmatpush2.bf16.msra.mxu0 0
    %743 = vmatprep.subr.bf16.mxu0 0
    %744 = vmatpush2.bf16.msra.mxu0 0
    %745 = vmatprep.subr.bf16.mxu0 0
    %746 = vmatpush2.bf16.msra.mxu0 0
    %747 = vmatprep.subr.bf16.mxu0 0
    %748 = vmatpush2.bf16.msra.mxu0 0
    %749 = vmatprep.subr.bf16.mxu0 0
    %750 = vmatpush2.bf16.msra.mxu0 0
    %751 = vmatprep.subr.bf16.mxu0 0
    %752 = vmatpush2.bf16.msra.mxu0 0
    %753 = vmatprep.subr.bf16.mxu0 0
    %754 = vmatpush2.bf16.msra.mxu0 0
    %755 = vmatprep.mubr.bf16.mxu0 0
    %756 = vmatmul.mubr.bf16.gmra.mxu0 %v718
    %v757 = vpop.f32.mrf.mxu0
    %v758 = vadd.f32 0.0, %v757
    %v759 = vpop.f32.mrf.mxu0
    %v760 = vpop.f32.mrf.mxu0
    %v761 = vpop.f32.mrf.mxu0
    %762 = vdwg.mxu0
    %v763 = vpack.c.bf16 %v758, %v758
    %v772 = vunpack.c.l.b16 %v231
    %v773 = vunpack.c.l.b16 %v232
    %v774 = vunpack.c.l.b16 %v233
    %v775 = vunpack.c.l.b16 %v234
    %v776 = vunpack.c.l.b16 %v235
    %v777 = vunpack.c.l.b16 %v236
    %v778 = vunpack.c.l.b16 %v237
    %v779 = vunpack.c.l.b16 %v238
    %v780 = vpack.c.b16 %v773, %v772
    %v781 = vpack.c.b16 %v775, %v774
    %v782 = vpack.c.b16 %v777, %v776
    %v783 = vpack.c.b16 %v779, %v778
    %v789 = vsel %vm413, %v763, 0
    %791 = vmatprep.subr.bf16.mxu0 0
    %792 = vmatpush1.bf16.msra.mxu0 0
    %793 = vmatprep.subr.bf16.mxu0 0
    %794 = vmatpush1.bf16.msra.mxu0 0
    %795 = vmatprep.subr.bf16.mxu0 0
    %796 = vmatpush1.bf16.msra.mxu0 0
    %797 = vmatprep.subr.bf16.mxu0 0
    %798 = vmatpush1.bf16.msra.mxu0 0
    %799 = vmatprep.subr.bf16.mxu0 0
    %800 = vmatpush1.bf16.msra.mxu0 %v783
    %801 = vmatprep.subr.bf16.mxu0 0
    %802 = vmatpush1.bf16.msra.mxu0 %v782
    %803 = vmatprep.subr.bf16.mxu0 0
    %804 = vmatpush1.bf16.msra.mxu0 %v781
    %805 = vmatprep.subr.bf16.mxu0 0
    %806 = vmatpush1.bf16.msra.mxu0 %v780
    %807 = vmatprep.subr.bf16.mxu0 0
    %808 = vmatpush2.bf16.msra.mxu0 0
    %809 = vmatprep.subr.bf16.mxu0 0
    %810 = vmatpush2.bf16.msra.mxu0 0
    %811 = vmatprep.subr.bf16.mxu0 0
    %812 = vmatpush2.bf16.msra.mxu0 0
    %813 = vmatprep.subr.bf16.mxu0 0
    %814 = vmatpush2.bf16.msra.mxu0 0
    %815 = vmatprep.subr.bf16.mxu0 0
    %816 = vmatpush2.bf16.msra.mxu0 0
    %817 = vmatprep.subr.bf16.mxu0 0
    %818 = vmatpush2.bf16.msra.mxu0 0
    %819 = vmatprep.subr.bf16.mxu0 0
    %820 = vmatpush2.bf16.msra.mxu0 0
    %821 = vmatprep.subr.bf16.mxu0 0
    %822 = vmatpush2.bf16.msra.mxu0 0
    %823 = vmatprep.mubr.bf16.mxu0 0
    %824 = vmatmul.mubr.bf16.gmra.mxu0 %v789
    %v825 = vpop.f32.mrf.mxu0
    %v826 = vadd.f32 0.0, %v825
    %v827 = vpop.f32.mrf.mxu0
    %v828 = vpop.f32.mrf.mxu0
    %v829 = vpop.f32.mrf.mxu0
    %830 = vdwg.mxu0
    %v831 = vmax.f32 %v826, 0.0
    %v832 = vld [vmem:[#allocation6] sm:$0xf]
    %v833 = vld [vmem:[#allocation6 + $0x4] sm:$0x3]
    %v834 = vld [vmem:[#allocation7] sm:$0xf]
    %v835 = vld [vmem:[#allocation7 + $0x4] sm:$0x3]
    %v836 = vld [vmem:[#allocation9] sm:$0xf]
    %v837 = vld [vmem:[#allocation13] sm:$0xf]
    %v838 = vld [vmem:[#allocation13 + $0x4] sm:$0xf]
    %v839 = vld [vmem:[#allocation15] sm:$0xf]
    %v840 = vld [vmem:[#allocation15 + $0x4] sm:$0xf]
    %v841 = vld [vmem:[#allocation15 + $0x8] sm:$0xf]
    %v842 = vld [vmem:[#allocation15 + $0xc] sm:$0xf]
    %v843 = vld [vmem:[#allocation15 + $0x10] sm:$0xf]
    %v844 = vld [vmem:[#allocation15 + $0x14] sm:$0xf]
    %v845 = vld [vmem:[#allocation15 + $0x18] sm:$0xf]
    %v846 = vld [vmem:[#allocation15 + $0x1c] sm:$0xf]
    %v847 = vld [vmem:[#allocation16] sm:$0xf]
    %v848 = vld [vmem:[#allocation16 + $0x4] sm:$0xf]
    %v849 = vld [vmem:[#allocation16 + $0x8] sm:$0xf]
    %v850 = vld [vmem:[#allocation16 + $0xc] sm:$0xf]
    %v851 = vld [vmem:[#allocation16 + $0x10] sm:$0xf]
    %v852 = vld [vmem:[#allocation16 + $0x14] sm:$0xf]
    %v853 = vld [vmem:[#allocation16 + $0x18] sm:$0xf]
    %v854 = vld [vmem:[#allocation16 + $0x1c] sm:$0xf]
    %v857 = vunpack.c.l.b16 %v832
    %v858 = vunpack.c.l.b16 %v833
    %v859 = vpack.c.b16 %v858, %v857
    %v862 = vunpack.c.l.b16 %v837
    %v863 = vunpack.c.l.b16 %v838
    %v864 = vpack.c.b16 %v863, %v862
    %v867 = vsel %vm255, %v859, 0
    %869 = vmatprep.subr.bf16.mxu0 0
    %870 = vmatpush1.bf16.msra.mxu0 0
    %871 = vmatprep.subr.bf16.mxu0 0
    %872 = vmatpush1.bf16.msra.mxu0 0
    %873 = vmatprep.subr.bf16.mxu0 0
    %874 = vmatpush1.bf16.msra.mxu0 0
    %875 = vmatprep.subr.bf16.mxu0 0
    %876 = vmatpush1.bf16.msra.mxu0 0
    %877 = vmatprep.subr.bf16.mxu0 0
    %878 = vmatpush1.bf16.msra.mxu0 0
    %879 = vmatprep.subr.bf16.mxu0 0
    %880 = vmatpush1.bf16.msra.mxu0 0
    %881 = vmatprep.subr.bf16.mxu0 0
    %882 = vmatpush1.bf16.msra.mxu0 0
    %883 = vmatprep.subr.bf16.mxu0 0
    %884 = vmatpush1.bf16.msra.mxu0 %v864
    %885 = vmatprep.subr.bf16.mxu0 0
    %886 = vmatpush2.bf16.msra.mxu0 0
    %887 = vmatprep.subr.bf16.mxu0 0
    %888 = vmatpush2.bf16.msra.mxu0 0
    %889 = vmatprep.subr.bf16.mxu0 0
    %890 = vmatpush2.bf16.msra.mxu0 0
    %891 = vmatprep.subr.bf16.mxu0 0
    %892 = vmatpush2.bf16.msra.mxu0 0
    %893 = vmatprep.subr.bf16.mxu0 0
    %894 = vmatpush2.bf16.msra.mxu0 0
    %895 = vmatprep.subr.bf16.mxu0 0
    %896 = vmatpush2.bf16.msra.mxu0 0
    %897 = vmatprep.subr.bf16.mxu0 0
    %898 = vmatpush2.bf16.msra.mxu0 0
    %899 = vmatprep.subr.bf16.mxu0 0
    %900 = vmatpush2.bf16.msra.mxu0 0
    %901 = vmatprep.mubr.bf16.mxu0 0
    %902 = vmatmul.mubr.bf16.gmra.mxu0 %v867
    %v903 = vpop.f32.mrf.mxu0
    %v904 = vadd.f32 0.0, %v903
    %v905 = vpop.f32.mrf.mxu0
    %v906 = vpop.f32.mrf.mxu0
    %v907 = vadd.f32 0.0, %v906
    %v908 = vpop.f32.mrf.mxu0
    %909 = vdwg.mxu0
    %v910 = vmax.f32 %v904, 0.0
    %v911 = vmax.f32 %v907, 0.0
    %v912 = vpack.c.bf16 %v911, %v910
    %v915 = vunpack.c.l.b16 %v834
    %v916 = vunpack.c.l.b16 %v835
    %v917 = vpack.c.b16 %v916, %v915
    %vm918 = vcmask 97280
    %v920 = vsel %vm918, %v917, 0
    %vm922 = vcmask 1045504
    %v924 = vsel %vm922, %v912, 0
    %926 = vmatprep.subr.bf16.mxu0 0
    %927 = vmatpush1.bf16.msra.mxu0 0
    %928 = vmatprep.subr.bf16.mxu0 0
    %929 = vmatpush1.bf16.msra.mxu0 0
    %930 = vmatprep.subr.bf16.mxu0 0
    %931 = vmatpush1.bf16.msra.mxu0 0
    %932 = vmatprep.subr.bf16.mxu0 0
    %933 = vmatpush1.bf16.msra.mxu0 0
    %934 = vmatprep.subr.bf16.mxu0 0
    %935 = vmatpush1.bf16.msra.mxu0 0
    %936 = vmatprep.subr.bf16.mxu0 0
    %937 = vmatpush1.bf16.msra.mxu0 0
    %938 = vmatprep.subr.bf16.mxu0 0
    %939 = vmatpush1.bf16.msra.mxu0 0
    %940 = vmatprep.subr.bf16.mxu0 0
    %941 = vmatpush1.bf16.msra.mxu0 %v924
    %942 = vmatprep.subr.bf16.mxu0 0
    %943 = vmatpush2.bf16.msra.mxu0 0
    %944 = vmatprep.subr.bf16.mxu0 0
    %945 = vmatpush2.bf16.msra.mxu0 0
    %946 = vmatprep.subr.bf16.mxu0 0
    %947 = vmatpush2.bf16.msra.mxu0 0
    %948 = vmatprep.subr.bf16.mxu0 0
    %949 = vmatpush2.bf16.msra.mxu0 0
    %950 = vmatprep.subr.bf16.mxu0 0
    %951 = vmatpush2.bf16.msra.mxu0 0
    %952 = vmatprep.subr.bf16.mxu0 0
    %953 = vmatpush2.bf16.msra.mxu0 0
    %954 = vmatprep.subr.bf16.mxu0 0
    %955 = vmatpush2.bf16.msra.mxu0 0
    %956 = vmatprep.subr.bf16.mxu0 0
    %957 = vmatpush2.bf16.msra.mxu0 0
    %958 = vmatprep.mubr.bf16.mxu0 0
    %959 = vmatmul.mubr.bf16.gmra.mxu0 %v920
    %v960 = vpop.f32.mrf.mxu0
    %v961 = vadd.f32 0.0, %v960
    %v962 = vpop.f32.mrf.mxu0
    %v963 = vpop.f32.mrf.mxu0
    %v964 = vadd.f32 0.0, %v963
    %v965 = vpop.f32.mrf.mxu0
    %966 = vdwg.mxu0
    %v967 = vpack.c.bf16 %v964, %v961
    %v976 = vunpack.c.l.b16 %v839
    %v977 = vunpack.c.l.b16 %v840
    %v978 = vunpack.c.l.b16 %v841
    %v979 = vunpack.c.l.b16 %v842
    %v980 = vunpack.c.l.b16 %v843
    %v981 = vunpack.c.l.b16 %v844
    %v982 = vunpack.c.l.b16 %v845
    %v983 = vunpack.c.l.b16 %v846
    %v984 = vpack.c.b16 %v977, %v976
    %v985 = vpack.c.b16 %v979, %v978
    %v986 = vpack.c.b16 %v981, %v980
    %v987 = vpack.c.b16 %v983, %v982
    %v993 = vsel %vm413, %v967, 0
    %995 = vmatprep.subr.bf16.mxu0 0
    %996 = vmatpush1.bf16.msra.mxu0 0
    %997 = vmatprep.subr.bf16.mxu0 0
    %998 = vmatpush1.bf16.msra.mxu0 0
    %999 = vmatprep.subr.bf16.mxu0 0
    %1000 = vmatpush1.bf16.msra.mxu0 0
    %1001 = vmatprep.subr.bf16.mxu0 0
    %1002 = vmatpush1.bf16.msra.mxu0 0
    %1003 = vmatprep.subr.bf16.mxu0 0
    %1004 = vmatpush1.bf16.msra.mxu0 %v987
    %1005 = vmatprep.subr.bf16.mxu0 0
    %1006 = vmatpush1.bf16.msra.mxu0 %v986
    %1007 = vmatprep.subr.bf16.mxu0 0
    %1008 = vmatpush1.bf16.msra.mxu0 %v985
    %1009 = vmatprep.subr.bf16.mxu0 0
    %1010 = vmatpush1.bf16.msra.mxu0 %v984
    %1011 = vmatprep.subr.bf16.mxu0 0
    %1012 = vmatpush2.bf16.msra.mxu0 0
    %1013 = vmatprep.subr.bf16.mxu0 0
    %1014 = vmatpush2.bf16.msra.mxu0 0
    %1015 = vmatprep.subr.bf16.mxu0 0
    %1016 = vmatpush2.bf16.msra.mxu0 0
    %1017 = vmatprep.subr.bf16.mxu0 0
    %1018 = vmatpush2.bf16.msra.mxu0 0
    %1019 = vmatprep.subr.bf16.mxu0 0
    %1020 = vmatpush2.bf16.msra.mxu0 0
    %1021 = vmatprep.subr.bf16.mxu0 0
    %1022 = vmatpush2.bf16.msra.mxu0 0
    %1023 = vmatprep.subr.bf16.mxu0 0
    %1024 = vmatpush2.bf16.msra.mxu0 0
    %1025 = vmatprep.subr.bf16.mxu0 0
    %1026 = vmatpush2.bf16.msra.mxu0 0
    %1027 = vmatprep.mubr.bf16.mxu0 0
    %1028 = vmatmul.mubr.bf16.gmra.mxu0 %v993
    %v1029 = vpop.f32.mrf.mxu0
    %v1030 = vadd.f32 0.0, %v1029
    %v1031 = vpop.f32.mrf.mxu0
    %v1032 = vpop.f32.mrf.mxu0
    %v1033 = vadd.f32 0.0, %v1032
    %v1034 = vpop.f32.mrf.mxu0
    %1035 = vdwg.mxu0
    %v1036 = vadd.f32 %v910, %v1030
    %v1037 = vadd.f32 %v911, %v1033
    %v1038 = vmax.f32 %v1036, 0.0
    %v1039 = vmax.f32 %v1037, 0.0
    %v1040 = vpack.c.bf16 %v1039, %v1038
    %v1042 = vsel %vm922, %v1040, 0
    %1044 = vmatprep.subr.bf16.mxu0 0
    %1045 = vmatpush1.bf16.msra.mxu0 0
    %1046 = vmatprep.subr.bf16.mxu0 0
    %1047 = vmatpush1.bf16.msra.mxu0 0
    %1048 = vmatprep.subr.bf16.mxu0 0
    %1049 = vmatpush1.bf16.msra.mxu0 0
    %1050 = vmatprep.subr.bf16.mxu0 0
    %1051 = vmatpush1.bf16.msra.mxu0 0
    %1052 = vmatprep.subr.bf16.mxu0 0
    %1053 = vmatpush1.bf16.msra.mxu0 0
    %1054 = vmatprep.subr.bf16.mxu0 0
    %1055 = vmatpush1.bf16.msra.mxu0 0
    %1056 = vmatprep.subr.bf16.mxu0 0
    %1057 = vmatpush1.bf16.msra.mxu0 0
    %1058 = vmatprep.subr.bf16.mxu0 0
    %1059 = vmatpush1.bf16.msra.mxu0 %v1042
    %1060 = vmatprep.subr.bf16.mxu0 0
    %1061 = vmatpush2.bf16.msra.mxu0 0
    %1062 = vmatprep.subr.bf16.mxu0 0
    %1063 = vmatpush2.bf16.msra.mxu0 0
    %1064 = vmatprep.subr.bf16.mxu0 0
    %1065 = vmatpush2.bf16.msra.mxu0 0
    %1066 = vmatprep.subr.bf16.mxu0 0
    %1067 = vmatpush2.bf16.msra.mxu0 0
    %1068 = vmatprep.subr.bf16.mxu0 0
    %1069 = vmatpush2.bf16.msra.mxu0 0
    %1070 = vmatprep.subr.bf16.mxu0 0
    %1071 = vmatpush2.bf16.msra.mxu0 0
    %1072 = vmatprep.subr.bf16.mxu0 0
    %1073 = vmatpush2.bf16.msra.mxu0 0
    %1074 = vmatprep.subr.bf16.mxu0 0
    %1075 = vmatpush2.bf16.msra.mxu0 0
    %1076 = vmatprep.mubr.bf16.mxu0 0
    %1077 = vmatmul.mubr.bf16.gmra.mxu0 %v920
    %v1078 = vpop.f32.mrf.mxu0
    %v1079 = vadd.f32 0.0, %v1078
    %v1080 = vpop.f32.mrf.mxu0
    %v1081 = vpop.f32.mrf.mxu0
    %v1082 = vadd.f32 0.0, %v1081
    %v1083 = vpop.f32.mrf.mxu0
    %1084 = vdwg.mxu0
    %v1085 = vpack.c.bf16 %v1082, %v1079
    %v1087 = vsel %vm413, %v1085, 0
    %1089 = vmatprep.subr.bf16.mxu0 0
    %1090 = vmatpush1.bf16.msra.mxu0 0
    %1091 = vmatprep.subr.bf16.mxu0 0
    %1092 = vmatpush1.bf16.msra.mxu0 0
    %1093 = vmatprep.subr.bf16.mxu0 0
    %1094 = vmatpush1.bf16.msra.mxu0 0
    %1095 = vmatprep.subr.bf16.mxu0 0
    %1096 = vmatpush1.bf16.msra.mxu0 0
    %1097 = vmatprep.subr.bf16.mxu0 0
    %1098 = vmatpush1.bf16.msra.mxu0 %v987
    %1099 = vmatprep.subr.bf16.mxu0 0
    %1100 = vmatpush1.bf16.msra.mxu0 %v986
    %1101 = vmatprep.subr.bf16.mxu0 0
    %1102 = vmatpush1.bf16.msra.mxu0 %v985
    %1103 = vmatprep.subr.bf16.mxu0 0
    %1104 = vmatpush1.bf16.msra.mxu0 %v984
    %1105 = vmatprep.subr.bf16.mxu0 0
    %1106 = vmatpush2.bf16.msra.mxu0 0
    %1107 = vmatprep.subr.bf16.mxu0 0
    %1108 = vmatpush2.bf16.msra.mxu0 0
    %1109 = vmatprep.subr.bf16.mxu0 0
    %1110 = vmatpush2.bf16.msra.mxu0 0
    %1111 = vmatprep.subr.bf16.mxu0 0
    %1112 = vmatpush2.bf16.msra.mxu0 0
    %1113 = vmatprep.subr.bf16.mxu0 0
    %1114 = vmatpush2.bf16.msra.mxu0 0
    %1115 = vmatprep.subr.bf16.mxu0 0
    %1116 = vmatpush2.bf16.msra.mxu0 0
    %1117 = vmatprep.subr.bf16.mxu0 0
    %1118 = vmatpush2.bf16.msra.mxu0 0
    %1119 = vmatprep.subr.bf16.mxu0 0
    %1120 = vmatpush2.bf16.msra.mxu0 0
    %1121 = vmatprep.mubr.bf16.mxu0 0
    %1122 = vmatmul.mubr.bf16.gmra.mxu0 %v1087
    %v1123 = vpop.f32.mrf.mxu0
    %v1124 = vadd.f32 0.0, %v1123
    %v1125 = vpop.f32.mrf.mxu0
    %v1126 = vpop.f32.mrf.mxu0
    %v1127 = vadd.f32 0.0, %v1126
    %v1128 = vpop.f32.mrf.mxu0
    %1129 = vdwg.mxu0
    %v1130 = vadd.f32 %v910, %v1124
    %v1131 = vadd.f32 %v911, %v1127
    %v1132 = vmax.f32 %v1130, 0.0
    %v1133 = vmax.f32 %v1131, 0.0
    %v1134 = vpack.c.bf16 %v1133, %v1132
    %v1136 = vsel %vm922, %v1134, 0
    %1138 = vmatprep.subr.bf16.mxu0 0
    %1139 = vmatpush1.bf16.msra.mxu0 0
    %1140 = vmatprep.subr.bf16.mxu0 0
    %1141 = vmatpush1.bf16.msra.mxu0 0
    %1142 = vmatprep.subr.bf16.mxu0 0
    %1143 = vmatpush1.bf16.msra.mxu0 0
    %1144 = vmatprep.subr.bf16.mxu0 0
    %1145 = vmatpush1.bf16.msra.mxu0 0
    %1146 = vmatprep.subr.bf16.mxu0 0
    %1147 = vmatpush1.bf16.msra.mxu0 0
    %1148 = vmatprep.subr.bf16.mxu0 0
    %1149 = vmatpush1.bf16.msra.mxu0 0
    %1150 = vmatprep.subr.bf16.mxu0 0
    %1151 = vmatpush1.bf16.msra.mxu0 0
    %1152 = vmatprep.subr.bf16.mxu0 0
    %1153 = vmatpush1.bf16.msra.mxu0 %v1136
    %1154 = vmatprep.subr.bf16.mxu0 0
    %1155 = vmatpush2.bf16.msra.mxu0 0
    %1156 = vmatprep.subr.bf16.mxu0 0
    %1157 = vmatpush2.bf16.msra.mxu0 0
    %1158 = vmatprep.subr.bf16.mxu0 0
    %1159 = vmatpush2.bf16.msra.mxu0 0
    %1160 = vmatprep.subr.bf16.mxu0 0
    %1161 = vmatpush2.bf16.msra.mxu0 0
    %1162 = vmatprep.subr.bf16.mxu0 0
    %1163 = vmatpush2.bf16.msra.mxu0 0
    %1164 = vmatprep.subr.bf16.mxu0 0
    %1165 = vmatpush2.bf16.msra.mxu0 0
    %1166 = vmatprep.subr.bf16.mxu0 0
    %1167 = vmatpush2.bf16.msra.mxu0 0
    %1168 = vmatprep.subr.bf16.mxu0 0
    %1169 = vmatpush2.bf16.msra.mxu0 0
    %1170 = vmatprep.mubr.bf16.mxu0 0
    %1171 = vmatmul.mubr.bf16.gmra.mxu0 %v920
    %v1172 = vpop.f32.mrf.mxu0
    %v1173 = vadd.f32 0.0, %v1172
    %v1174 = vpop.f32.mrf.mxu0
    %v1175 = vpop.f32.mrf.mxu0
    %v1176 = vadd.f32 0.0, %v1175
    %v1177 = vpop.f32.mrf.mxu0
    %1178 = vdwg.mxu0
    %v1179 = vpack.c.bf16 %v1176, %v1173
    %v1181 = vsel %vm413, %v1179, 0
    %1183 = vmatprep.subr.bf16.mxu0 0
    %1184 = vmatpush1.bf16.msra.mxu0 0
    %1185 = vmatprep.subr.bf16.mxu0 0
    %1186 = vmatpush1.bf16.msra.mxu0 0
    %1187 = vmatprep.subr.bf16.mxu0 0
    %1188 = vmatpush1.bf16.msra.mxu0 0
    %1189 = vmatprep.subr.bf16.mxu0 0
    %1190 = vmatpush1.bf16.msra.mxu0 0
    %1191 = vmatprep.subr.bf16.mxu0 0
    %1192 = vmatpush1.bf16.msra.mxu0 %v987
    %1193 = vmatprep.subr.bf16.mxu0 0
    %1194 = vmatpush1.bf16.msra.mxu0 %v986
    %1195 = vmatprep.subr.bf16.mxu0 0
    %1196 = vmatpush1.bf16.msra.mxu0 %v985
    %1197 = vmatprep.subr.bf16.mxu0 0
    %1198 = vmatpush1.bf16.msra.mxu0 %v984
    %1199 = vmatprep.subr.bf16.mxu0 0
    %1200 = vmatpush2.bf16.msra.mxu0 0
    %1201 = vmatprep.subr.bf16.mxu0 0
    %1202 = vmatpush2.bf16.msra.mxu0 0
    %1203 = vmatprep.subr.bf16.mxu0 0
    %1204 = vmatpush2.bf16.msra.mxu0 0
    %1205 = vmatprep.subr.bf16.mxu0 0
    %1206 = vmatpush2.bf16.msra.mxu0 0
    %1207 = vmatprep.subr.bf16.mxu0 0
    %1208 = vmatpush2.bf16.msra.mxu0 0
    %1209 = vmatprep.subr.bf16.mxu0 0
    %1210 = vmatpush2.bf16.msra.mxu0 0
    %1211 = vmatprep.subr.bf16.mxu0 0
    %1212 = vmatpush2.bf16.msra.mxu0 0
    %1213 = vmatprep.subr.bf16.mxu0 0
    %1214 = vmatpush2.bf16.msra.mxu0 0
    %1215 = vmatprep.mubr.bf16.mxu0 0
    %1216 = vmatmul.mubr.bf16.gmra.mxu0 %v1181
    %v1217 = vpop.f32.mrf.mxu0
    %v1218 = vadd.f32 0.0, %v1217
    %v1219 = vpop.f32.mrf.mxu0
    %v1220 = vpop.f32.mrf.mxu0
    %v1221 = vadd.f32 0.0, %v1220
    %v1222 = vpop.f32.mrf.mxu0
    %1223 = vdwg.mxu0
    %v1224 = vadd.f32 %v910, %v1218
    %v1225 = vadd.f32 %v911, %v1221
    %v1226 = vmax.f32 %v1224, 0.0
    %v1227 = vmax.f32 %v1225, 0.0
    %v1228 = vpack.c.bf16 %v1227, %v1226
    %v1230 = vsel %vm918, %v836, 0
    %v1233 = vsel %vm922, %v1228, 0
    %1235 = vmatprep.subr.bf16.mxu0 0
    %1236 = vmatpush1.bf16.msra.mxu0 0
    %1237 = vmatprep.subr.bf16.mxu0 0
    %1238 = vmatpush1.bf16.msra.mxu0 0
    %1239 = vmatprep.subr.bf16.mxu0 0
    %1240 = vmatpush1.bf16.msra.mxu0 0
    %1241 = vmatprep.subr.bf16.mxu0 0
    %1242 = vmatpush1.bf16.msra.mxu0 0
    %1243 = vmatprep.subr.bf16.mxu0 0
    %1244 = vmatpush1.bf16.msra.mxu0 0
    %1245 = vmatprep.subr.bf16.mxu0 0
    %1246 = vmatpush1.bf16.msra.mxu0 0
    %1247 = vmatprep.subr.bf16.mxu0 0
    %1248 = vmatpush1.bf16.msra.mxu0 0
    %1249 = vmatprep.subr.bf16.mxu0 0
    %1250 = vmatpush1.bf16.msra.mxu0 %v1233
    %1251 = vmatprep.subr.bf16.mxu0 0
    %1252 = vmatpush2.bf16.msra.mxu0 0
    %1253 = vmatprep.subr.bf16.mxu0 0
    %1254 = vmatpush2.bf16.msra.mxu0 0
    %1255 = vmatprep.subr.bf16.mxu0 0
    %1256 = vmatpush2.bf16.msra.mxu0 0
    %1257 = vmatprep.subr.bf16.mxu0 0
    %1258 = vmatpush2.bf16.msra.mxu0 0
    %1259 = vmatprep.subr.bf16.mxu0 0
    %1260 = vmatpush2.bf16.msra.mxu0 0
    %1261 = vmatprep.subr.bf16.mxu0 0
    %1262 = vmatpush2.bf16.msra.mxu0 0
    %1263 = vmatprep.subr.bf16.mxu0 0
    %1264 = vmatpush2.bf16.msra.mxu0 0
    %1265 = vmatprep.subr.bf16.mxu0 0
    %1266 = vmatpush2.bf16.msra.mxu0 0
    %1267 = vmatprep.mubr.bf16.mxu0 0
    %1268 = vmatmul.mubr.bf16.gmra.mxu0 %v1230
    %v1269 = vpop.f32.mrf.mxu0
    %v1270 = vadd.f32 0.0, %v1269
    %v1271 = vpop.f32.mrf.mxu0
    %v1272 = vpop.f32.mrf.mxu0
    %v1273 = vpop.f32.mrf.mxu0
    %1274 = vdwg.mxu0
    %v1275 = vpack.c.bf16 %v1270, %v1270
    %v1284 = vunpack.c.l.b16 %v847
    %v1285 = vunpack.c.l.b16 %v848
    %v1286 = vunpack.c.l.b16 %v849
    %v1287 = vunpack.c.l.b16 %v850
    %v1288 = vunpack.c.l.b16 %v851
    %v1289 = vunpack.c.l.b16 %v852
    %v1290 = vunpack.c.l.b16 %v853
    %v1291 = vunpack.c.l.b16 %v854
    %v1292 = vpack.c.b16 %v1285, %v1284
    %v1293 = vpack.c.b16 %v1287, %v1286
    %v1294 = vpack.c.b16 %v1289, %v1288
    %v1295 = vpack.c.b16 %v1291, %v1290
    %v1301 = vsel %vm413, %v1275, 0
    %1303 = vmatprep.subr.bf16.mxu0 0
    %1304 = vmatpush1.bf16.msra.mxu0 0
    %1305 = vmatprep.subr.bf16.mxu0 0
    %1306 = vmatpush1.bf16.msra.mxu0 0
    %1307 = vmatprep.subr.bf16.mxu0 0
    %1308 = vmatpush1.bf16.msra.mxu0 0
    %1309 = vmatprep.subr.bf16.mxu0 0
    %1310 = vmatpush1.bf16.msra.mxu0 0
    %1311 = vmatprep.subr.bf16.mxu0 0
    %1312 = vmatpush1.bf16.msra.mxu0 %v1295
    %1313 = vmatprep.subr.bf16.mxu0 0
    %1314 = vmatpush1.bf16.msra.mxu0 %v1294
    %1315 = vmatprep.subr.bf16.mxu0 0
    %1316 = vmatpush1.bf16.msra.mxu0 %v1293
    %1317 = vmatprep.subr.bf16.mxu0 0
    %1318 = vmatpush1.bf16.msra.mxu0 %v1292
    %1319 = vmatprep.subr.bf16.mxu0 0
    %1320 = vmatpush2.bf16.msra.mxu0 0
    %1321 = vmatprep.subr.bf16.mxu0 0
    %1322 = vmatpush2.bf16.msra.mxu0 0
    %1323 = vmatprep.subr.bf16.mxu0 0
    %1324 = vmatpush2.bf16.msra.mxu0 0
    %1325 = vmatprep.subr.bf16.mxu0 0
    %1326 = vmatpush2.bf16.msra.mxu0 0
    %1327 = vmatprep.subr.bf16.mxu0 0
    %1328 = vmatpush2.bf16.msra.mxu0 0
    %1329 = vmatprep.subr.bf16.mxu0 0
    %1330 = vmatpush2.bf16.msra.mxu0 0
    %1331 = vmatprep.subr.bf16.mxu0 0
    %1332 = vmatpush2.bf16.msra.mxu0 0
    %1333 = vmatprep.subr.bf16.mxu0 0
    %1334 = vmatpush2.bf16.msra.mxu0 0
    %1335 = vmatprep.mubr.bf16.mxu0 0
    %1336 = vmatmul.mubr.bf16.gmra.mxu0 %v1301
    %v1337 = vpop.f32.mrf.mxu0
    %v1338 = vadd.f32 0.0, %v1337
    %v1339 = vpop.f32.mrf.mxu0
    %v1340 = vpop.f32.mrf.mxu0
    %v1341 = vpop.f32.mrf.mxu0
    %1342 = vdwg.mxu0
    %v1343 = vmax.f32 %v1338, 0.0
    %v1344 = vld [vmem:[#allocation10] sm:$0xff]
    %vm1345 = vcmask 48128
    %v1347 = vsel %vm1345, %v1344, 0
    %v1350 = vsel %vm922, %v831, 0
    %1352 = vmatprep.subr.mxu0 0.0
    %1353 = vmatpush1.msra.mxu0 0.0
    %1354 = vmatprep.subr.mxu0 0.0
    %1355 = vmatpush1.msra.mxu0 0.0
    %1356 = vmatprep.subr.mxu0 0.0
    %1357 = vmatpush1.msra.mxu0 0.0
    %1358 = vmatprep.subr.mxu0 0.0
    %1359 = vmatpush1.msra.mxu0 0.0
    %1360 = vmatprep.subr.mxu0 0.0
    %1361 = vmatpush1.msra.mxu0 0.0
    %1362 = vmatprep.subr.mxu0 0.0
    %1363 = vmatpush1.msra.mxu0 0.0
    %1364 = vmatprep.subr.mxu0 0.0
    %1365 = vmatpush1.msra.mxu0 0.0
    %1366 = vmatprep.subr.mxu0 0.0
    %1367 = vmatpush1.msra.mxu0 0.0
    %1368 = vmatprep.subr.mxu0 0.0
    %1369 = vmatpush1.msra.mxu0 0.0
    %1370 = vmatprep.subr.mxu0 0.0
    %1371 = vmatpush1.msra.mxu0 0.0
    %1372 = vmatprep.subr.mxu0 0.0
    %1373 = vmatpush1.msra.mxu0 0.0
    %1374 = vmatprep.subr.mxu0 0.0
    %1375 = vmatpush1.msra.mxu0 0.0
    %1376 = vmatprep.subr.mxu0 0.0
    %1377 = vmatpush1.msra.mxu0 0.0
    %1378 = vmatprep.subr.mxu0 0.0
    %1379 = vmatpush1.msra.mxu0 0.0
    %1380 = vmatprep.subr.mxu0 0.0
    %1381 = vmatpush1.msra.mxu0 0.0
    %1382 = vmatprep.subr.mxu0 0.0
    %1383 = vmatpush1.msra.mxu0 %v1350
    %1384 = vmatprep.subr.mxu0 0.0
    %1385 = vmatpush2.msra.mxu0 0.0
    %1386 = vmatprep.subr.mxu0 0.0
    %1387 = vmatpush2.msra.mxu0 0.0
    %1388 = vmatprep.subr.mxu0 0.0
    %1389 = vmatpush2.msra.mxu0 0.0
    %1390 = vmatprep.subr.mxu0 0.0
    %1391 = vmatpush2.msra.mxu0 0.0
    %1392 = vmatprep.subr.mxu0 0.0
    %1393 = vmatpush2.msra.mxu0 0.0
    %1394 = vmatprep.subr.mxu0 0.0
    %1395 = vmatpush2.msra.mxu0 0.0
    %1396 = vmatprep.subr.mxu0 0.0
    %1397 = vmatpush2.msra.mxu0 0.0
    %1398 = vmatprep.subr.mxu0 0.0
    %1399 = vmatpush2.msra.mxu0 0.0
    %1400 = vmatprep.subr.mxu0 0.0
    %1401 = vmatpush2.msra.mxu0 0.0
    %1402 = vmatprep.subr.mxu0 0.0
    %1403 = vmatpush2.msra.mxu0 0.0
    %1404 = vmatprep.subr.mxu0 0.0
    %1405 = vmatpush2.msra.mxu0 0.0
    %1406 = vmatprep.subr.mxu0 0.0
    %1407 = vmatpush2.msra.mxu0 0.0
    %1408 = vmatprep.subr.mxu0 0.0
    %1409 = vmatpush2.msra.mxu0 0.0
    %1410 = vmatprep.subr.mxu0 0.0
    %1411 = vmatpush2.msra.mxu0 0.0
    %1412 = vmatprep.subr.mxu0 0.0
    %1413 = vmatpush2.msra.mxu0 0.0
    %1414 = vmatprep.subr.mxu0 0.0
    %1415 = vmatpush2.msra.mxu0 0.0
    %1416 = vmatprep.mubr.f32.mxu0 0.0
    %1417 = vmatmul.mubr.f32.gmra.mxu0 %v1347
    %v1418 = vpop.f32.mrf.mxu0
    %v1419 = vadd.f32 %v1343, %v1418
    %v1420 = vpop.f32.mrf.mxu0
    %1421 = vdwg.mxu0
    %v1422 = vpack.c.bf16 %v1419, %v1419
    %v1423 = vld [vmem:[%s13] sm:$0xf]
    %v1424 = vld [vmem:[%s13 + $0x4] sm:$0xf]
    %v1425 = vld [vmem:[%s13 + $0x8] sm:$0xf]
    %v1426 = vld [vmem:[%s13 + $0xc] sm:$0xf]
    %v1427 = vld [vmem:[%s13 + $0x10] sm:$0xf]
    %v1428 = vld [vmem:[%s13 + $0x14] sm:$0xf]
    %v1429 = vld [vmem:[%s13 + $0x18] sm:$0xf]
    %v1430 = vld [vmem:[%s13 + $0x1c] sm:$0xf]
    %v1431 = vld [vmem:[%s14] sm:$0x1]
    %v1433 = vlaneseq
    %v1434 = vshrl.u32 %v1433, 7
    %v1435 = vsub.s32 0, %v1434
    %v1436 = vrot.slane %v1431, %v1435
    %v1446 = vunpack.c.l.b16 %v1423
    %v1447 = vunpack.c.l.b16 %v1424
    %v1448 = vunpack.c.l.b16 %v1425
    %v1449 = vunpack.c.l.b16 %v1426
    %v1450 = vunpack.c.l.b16 %v1427
    %v1451 = vunpack.c.l.b16 %v1428
    %v1452 = vunpack.c.l.b16 %v1429
    %v1453 = vunpack.c.l.b16 %v1430
    %v1454 = vpack.c.b16 %v1447, %v1446
    %v1455 = vpack.c.b16 %v1449, %v1448
    %v1456 = vpack.c.b16 %v1451, %v1450
    %v1457 = vpack.c.b16 %v1453, %v1452
    %v1463 = vsel %vm413, %v1422, 0
    %1465 = vmatprep.subr.bf16.mxu0 0
    %1466 = vmatpush1.bf16.msra.mxu0 0
    %1467 = vmatprep.subr.bf16.mxu0 0
    %1468 = vmatpush1.bf16.msra.mxu0 0
    %1469 = vmatprep.subr.bf16.mxu0 0
    %1470 = vmatpush1.bf16.msra.mxu0 0
    %1471 = vmatprep.subr.bf16.mxu0 0
    %1472 = vmatpush1.bf16.msra.mxu0 0
    %1473 = vmatprep.subr.bf16.mxu0 0
    %1474 = vmatpush1.bf16.msra.mxu0 %v1457
    %1475 = vmatprep.subr.bf16.mxu0 0
    %1476 = vmatpush1.bf16.msra.mxu0 %v1456
    %1477 = vmatprep.subr.bf16.mxu0 0
    %1478 = vmatpush1.bf16.msra.mxu0 %v1455
    %1479 = vmatprep.subr.bf16.mxu0 0
    %1480 = vmatpush1.bf16.msra.mxu0 %v1454
    %1481 = vmatprep.subr.bf16.mxu0 0
    %1482 = vmatpush2.bf16.msra.mxu0 0
    %1483 = vmatprep.subr.bf16.mxu0 0
    %1484 = vmatpush2.bf16.msra.mxu0 0
    %1485 = vmatprep.subr.bf16.mxu0 0
    %1486 = vmatpush2.bf16.msra.mxu0 0
    %1487 = vmatprep.subr.bf16.mxu0 0
    %1488 = vmatpush2.bf16.msra.mxu0 0
    %1489 = vmatprep.subr.bf16.mxu0 0
    %1490 = vmatpush2.bf16.msra.mxu0 0
    %1491 = vmatprep.subr.bf16.mxu0 0
    %1492 = vmatpush2.bf16.msra.mxu0 0
    %1493 = vmatprep.subr.bf16.mxu0 0
    %1494 = vmatpush2.bf16.msra.mxu0 0
    %1495 = vmatprep.subr.bf16.mxu0 0
    %1496 = vmatpush2.bf16.msra.mxu0 0
    %1497 = vmatprep.mubr.bf16.mxu0 0
    %1498 = vmatmul.mubr.bf16.gmra.mxu0 %v1463
    %v1499 = vpop.f32.mrf.mxu0
    %v1500 = vadd.f32 %v1436, %v1499
    %v1501 = vpop.f32.mrf.mxu0
    %v1502 = vpop.f32.mrf.mxu0
    %v1503 = vpop.f32.mrf.mxu0
    %1504 = vdwg.mxu0
    %v1505 = vmax.f32 %v1500, 0.0
    %v1506 = vpack.c.bf16 %v1505, %v1505
    %v1507 = vld [vmem:[%s15] sm:$0xf]
    %v1508 = vld [vmem:[%s15 + $0x4] sm:$0xf]
    %v1509 = vld [vmem:[%s15 + $0x8] sm:$0xf]
    %v1510 = vld [vmem:[%s15 + $0xc] sm:$0xf]
    %v1511 = vld [vmem:[%s16] sm:$0x1]
    %v1513 = vlaneseq
    %v1514 = vshrl.u32 %v1513, 7
    %v1515 = vsub.s32 0, %v1514
    %v1516 = vrot.slane %v1511, %v1515
    %v1522 = vunpack.c.l.b16 %v1507
    %v1523 = vunpack.c.l.b16 %v1508
    %v1524 = vunpack.c.l.b16 %v1509
    %v1525 = vunpack.c.l.b16 %v1510
    %v1526 = vpack.c.b16 %v1523, %v1522
    %v1527 = vpack.c.b16 %v1525, %v1524
    %vm1530 = vcmask 261120
    %v1532 = vsel %vm1530, %v1506, 0
    %1534 = vmatprep.subr.bf16.mxu0 0
    %1535 = vmatpush1.bf16.msra.mxu0 0
    %1536 = vmatprep.subr.bf16.mxu0 0
    %1537 = vmatpush1.bf16.msra.mxu0 0
    %1538 = vmatprep.subr.bf16.mxu0 0
    %1539 = vmatpush1.bf16.msra.mxu0 0
    %1540 = vmatprep.subr.bf16.mxu0 0
    %1541 = vmatpush1.bf16.msra.mxu0 0
    %1542 = vmatprep.subr.bf16.mxu0 0
    %1543 = vmatpush1.bf16.msra.mxu0 0
    %1544 = vmatprep.subr.bf16.mxu0 0
    %1545 = vmatpush1.bf16.msra.mxu0 0
    %1546 = vmatprep.subr.bf16.mxu0 0
    %1547 = vmatpush1.bf16.msra.mxu0 %v1527
    %1548 = vmatprep.subr.bf16.mxu0 0
    %1549 = vmatpush1.bf16.msra.mxu0 %v1526
    %1550 = vmatprep.subr.bf16.mxu0 0
    %1551 = vmatpush2.bf16.msra.mxu0 0
    %1552 = vmatprep.subr.bf16.mxu0 0
    %1553 = vmatpush2.bf16.msra.mxu0 0
    %1554 = vmatprep.subr.bf16.mxu0 0
    %1555 = vmatpush2.bf16.msra.mxu0 0
    %1556 = vmatprep.subr.bf16.mxu0 0
    %1557 = vmatpush2.bf16.msra.mxu0 0
    %1558 = vmatprep.subr.bf16.mxu0 0
    %1559 = vmatpush2.bf16.msra.mxu0 0
    %1560 = vmatprep.subr.bf16.mxu0 0
    %1561 = vmatpush2.bf16.msra.mxu0 0
    %1562 = vmatprep.subr.bf16.mxu0 0
    %1563 = vmatpush2.bf16.msra.mxu0 0
    %1564 = vmatprep.subr.bf16.mxu0 0
    %1565 = vmatpush2.bf16.msra.mxu0 0
    %1566 = vmatprep.mubr.bf16.mxu0 0
    %1567 = vmatmul.mubr.bf16.gmra.mxu0 %v1532
    %v1568 = vpop.f32.mrf.mxu0
    %v1569 = vadd.f32 %v1516, %v1568
    %v1570 = vpop.f32.mrf.mxu0
    %v1571 = vpop.f32.mrf.mxu0
    %v1572 = vpop.f32.mrf.mxu0
    %1573 = vdwg.mxu0
    %v1574 = vmax.f32 %v1569, 0.0
    %v1575 = vpack.c.bf16 %v1574, %v1574
    %v1576 = vld [vmem:[%s17] sm:$0xf]
    %v1577 = vld [vmem:[%s17 + $0x4] sm:$0xf]
    %v1578 = vld [vmem:[%s17 + $0x8] sm:$0xf]
    %v1579 = vld [vmem:[%s17 + $0xc] sm:$0xf]
    %v1580 = vld [vmem:[%s18] sm:$0x1]
    %v1582 = vlaneseq
    %v1583 = vshrl.u32 %v1582, 7
    %v1584 = vsub.s32 0, %v1583
    %v1585 = vrot.slane %v1580, %v1584
    %v1591 = vunpack.c.l.b16 %v1576
    %v1592 = vunpack.c.l.b16 %v1577
    %v1593 = vunpack.c.l.b16 %v1578
    %v1594 = vunpack.c.l.b16 %v1579
    %v1595 = vpack.c.b16 %v1592, %v1591
    %v1596 = vpack.c.b16 %v1594, %v1593
    %v1600 = vsel %vm1530, %v1575, 0
    %1602 = vmatprep.subr.bf16.mxu0 0
    %1603 = vmatpush1.bf16.msra.mxu0 0
    %1604 = vmatprep.subr.bf16.mxu0 0
    %1605 = vmatpush1.bf16.msra.mxu0 0
    %1606 = vmatprep.subr.bf16.mxu0 0
    %1607 = vmatpush1.bf16.msra.mxu0 0
    %1608 = vmatprep.subr.bf16.mxu0 0
    %1609 = vmatpush1.bf16.msra.mxu0 0
    %1610 = vmatprep.subr.bf16.mxu0 0
    %1611 = vmatpush1.bf16.msra.mxu0 0
    %1612 = vmatprep.subr.bf16.mxu0 0
    %1613 = vmatpush1.bf16.msra.mxu0 0
    %1614 = vmatprep.subr.bf16.mxu0 0
    %1615 = vmatpush1.bf16.msra.mxu0 %v1596
    %1616 = vmatprep.subr.bf16.mxu0 0
    %1617 = vmatpush1.bf16.msra.mxu0 %v1595
    %1618 = vmatprep.subr.bf16.mxu0 0
    %1619 = vmatpush2.bf16.msra.mxu0 0
    %1620 = vmatprep.subr.bf16.mxu0 0
    %1621 = vmatpush2.bf16.msra.mxu0 0
    %1622 = vmatprep.subr.bf16.mxu0 0
    %1623 = vmatpush2.bf16.msra.mxu0 0
    %1624 = vmatprep.subr.bf16.mxu0 0
    %1625 = vmatpush2.bf16.msra.mxu0 0
    %1626 = vmatprep.subr.bf16.mxu0 0
    %1627 = vmatpush2.bf16.msra.mxu0 0
    %1628 = vmatprep.subr.bf16.mxu0 0
    %1629 = vmatpush2.bf16.msra.mxu0 0
    %1630 = vmatprep.subr.bf16.mxu0 0
    %1631 = vmatpush2.bf16.msra.mxu0 0
    %1632 = vmatprep.subr.bf16.mxu0 0
    %1633 = vmatpush2.bf16.msra.mxu0 0
    %1634 = vmatprep.mubr.bf16.mxu0 0
    %1635 = vmatmul.mubr.bf16.gmra.mxu0 %v1600
    %v1636 = vpop.f32.mrf.mxu0
    %v1637 = vadd.f32 %v1585, %v1636
    %v1638 = vpop.f32.mrf.mxu0
    %v1639 = vpop.f32.mrf.mxu0
    %v1640 = vpop.f32.mrf.mxu0
    %1641 = vdwg.mxu0
    %v1642 = vmax.f32 %v1637, 0.0
    %v1643 = vpack.c.bf16 %v1642, %v1642
    %v1644 = vld [vmem:[#allocation18] sm:$0xf]
    %v1645 = vld [vmem:[#allocation18 + $0x4] sm:$0xf]
    %v1646 = vld [vmem:[#allocation18 + $0x8] sm:$0xf]
    %v1647 = vld [vmem:[#allocation18 + $0xc] sm:$0xf]
    %v1648 = vld [vmem:[%s20] sm:$0x1]
    %v1650 = vlaneseq
    %v1651 = vshrl.u32 %v1650, 7
    %v1652 = vsub.s32 0, %v1651
    %v1653 = vrot.slane %v1648, %v1652
    %v1659 = vunpack.c.l.b16 %v1644
    %v1660 = vunpack.c.l.b16 %v1645
    %v1661 = vunpack.c.l.b16 %v1646
    %v1662 = vunpack.c.l.b16 %v1647
    %v1663 = vpack.c.b16 %v1660, %v1659
    %v1664 = vpack.c.b16 %v1662, %v1661
    %v1668 = vsel %vm1530, %v1643, 0
    %1670 = vmatprep.subr.bf16.mxu0 0
    %1671 = vmatpush1.bf16.msra.mxu0 0
    %1672 = vmatprep.subr.bf16.mxu0 0
    %1673 = vmatpush1.bf16.msra.mxu0 0
    %1674 = vmatprep.subr.bf16.mxu0 0
    %1675 = vmatpush1.bf16.msra.mxu0 0
    %1676 = vmatprep.subr.bf16.mxu0 0
    %1677 = vmatpush1.bf16.msra.mxu0 0
    %1678 = vmatprep.subr.bf16.mxu0 0
    %1679 = vmatpush1.bf16.msra.mxu0 0
    %1680 = vmatprep.subr.bf16.mxu0 0
    %1681 = vmatpush1.bf16.msra.mxu0 0
    %1682 = vmatprep.subr.bf16.mxu0 0
    %1683 = vmatpush1.bf16.msra.mxu0 %v1664
    %1684 = vmatprep.subr.bf16.mxu0 0
    %1685 = vmatpush1.bf16.msra.mxu0 %v1663
    %1686 = vmatprep.subr.bf16.mxu0 0
    %1687 = vmatpush2.bf16.msra.mxu0 0
    %1688 = vmatprep.subr.bf16.mxu0 0
    %1689 = vmatpush2.bf16.msra.mxu0 0
    %1690 = vmatprep.subr.bf16.mxu0 0
    %1691 = vmatpush2.bf16.msra.mxu0 0
    %1692 = vmatprep.subr.bf16.mxu0 0
    %1693 = vmatpush2.bf16.msra.mxu0 0
    %1694 = vmatprep.subr.bf16.mxu0 0
    %1695 = vmatpush2.bf16.msra.mxu0 0
    %1696 = vmatprep.subr.bf16.mxu0 0
    %1697 = vmatpush2.bf16.msra.mxu0 0
    %1698 = vmatprep.subr.bf16.mxu0 0
    %1699 = vmatpush2.bf16.msra.mxu0 0
    %1700 = vmatprep.subr.bf16.mxu0 0
    %1701 = vmatpush2.bf16.msra.mxu0 0
    %1702 = vmatprep.mubr.bf16.mxu0 0
    %1703 = vmatmul.mubr.bf16.gmra.mxu0 %v1668
    %v1704 = vpop.f32.mrf.mxu0
    %v1705 = vadd.f32 %v1653, %v1704
    %v1706 = vpop.f32.mrf.mxu0
    %v1707 = vpop.f32.mrf.mxu0
    %v1708 = vpop.f32.mrf.mxu0
    %1709 = vdwg.mxu0
    %1710 = vst [vmem:[%s21] sm:$0xff] %v1705
    // Predicated region
    $region130: #{just_mpnn_forward.1} parent=1 // pred_check
      _
    $region131: #{just_mpnn_forward.1} parent=1 // pred_check_branch
      %1712 = sbr.rel (0) target = $region133
    $region132: #{just_mpnn_forward.1} parent=1 // pred_region
      _
    $region133: #{just_mpnn_forward.1} parent=1 // pred_fallthru
      _
    // Predicated region
    $region134: #{just_mpnn_forward.1} parent=1 // pred_check
      _
    $region135: #{just_mpnn_forward.1} parent=1 // pred_check_branch
      %1714 = sbr.rel (0) target = $region137
    $region136: #{just_mpnn_forward.1} parent=1 // pred_region
      _
    $region137: #{just_mpnn_forward.1} parent=1 // pred_fallthru
      _
    %1715 = vsyncpa [#allocation3], 1
    %1716 = vsyncpa [#allocation5], 1
    %1717 = vsyncpa [#allocation8], 1
    %1718 = vsyncpa [#allocation11], 1
    %1719 = vsyncpa [#allocation14], 1
    %1720 = vsyncpa [#allocation17], 1

</llo_original>
